<compile_context>
chip_gen: v7x
topology: tpu7x:2x2x1
jax: 0.10.0
libtpu: 0.0.40
codegen_flags: <defaults>
</compile_context>

<pallas_src>
import jax
import jax.numpy as jnp
from jax.experimental import pallas as pl
from jax.experimental.pallas import tpu as pltpu

IN_DIM = 17 * 17          # 289
HIDDEN = [512, 512]
N_CLASSES = 2
LEAKY_SLOPE = 0.01        # nn.LeakyReLU default negative_slope
BN_EPS = 1e-5             # nn.BatchNorm1d default eps

K_PAD = 384               # 289 -> 3*128 lanes (zero padded)
N_PAD = 128               # 2   -> 128 lanes  (zero padded, lane-dense output)
TILE_B = 512              # batch tile for the grid


def _round_up(n, m):
    return ((n + m - 1) // m) * m


def _leaky_relu(x, slope=LEAKY_SLOPE):
    return jnp.where(x > 0, x, slope * x)


def mlp3_kernel(x_ref,
                w1_ref, t1_ref,
                w2_ref, t2_ref,
                w3_ref, b3_ref,
                out_ref):
    """Fused forward for one batch tile.

    x_ref:  (TB, K_PAD)  bf16  (zero-padded flattened input)
    w*_ref: bf16 weights with eval-BN scale already folded in (w1/w2)
    t*_ref: (1, 512) f32 folded BN shift;  b3_ref: (1, N_PAD) f32 bias
    out:    (TB, N_PAD)  f32 logits (first N_CLASSES columns valid)
    """
    # ---- layer 1: Linear(384 -> 512) [BN scale folded] + shift + LeakyReLU ----
    h1 = jnp.dot(x_ref[...], w1_ref[...], preferred_element_type=jnp.float32)
    h1 = _leaky_relu(h1 + t1_ref[...])

    # ---- layer 2: Linear(512 -> 512) [BN scale folded] + shift + LeakyReLU ----
    h2 = jnp.dot(h1.astype(jnp.bfloat16), w2_ref[...],
                 preferred_element_type=jnp.float32)
    h2 = _leaky_relu(h2 + t2_ref[...])

    # ---- layer 3: Linear(512 -> N_PAD) (extra columns are zero) ----
    logits = jnp.dot(h2.astype(jnp.bfloat16), w3_ref[...],
                     preferred_element_type=jnp.float32)
    out_ref[...] = (logits + b3_ref[...]).astype(out_ref.dtype)


def init_params(key):
    """Deterministic synthetic parameters matching MLP3's layer shapes."""
    dims = [IN_DIM] + HIDDEN + [N_CLASSES]
    ks = jax.random.split(key, 16)
    params = {}
    ki = 0
    for li in range(3):
        fan_in, fan_out = dims[li], dims[li + 1]
        bound = 1.0 / jnp.sqrt(jnp.float32(fan_in))
        params[f"w{li+1}"] = jax.random.uniform(
            ks[ki], (fan_in, fan_out), jnp.float32, -bound, bound); ki += 1
        params[f"b{li+1}"] = jax.random.uniform(
            ks[ki], (fan_out,), jnp.float32, -bound, bound); ki += 1
    # BatchNorm1d params + running stats for the two hidden layers (eval mode)
    for li, h in enumerate(HIDDEN, start=1):
        params[f"bn{li}_gamma"] = jnp.ones((h,), jnp.float32)
        params[f"bn{li}_beta"] = jnp.zeros((h,), jnp.float32)
        params[f"bn{li}_mean"] = 0.01 * jax.random.normal(ks[ki], (h,), jnp.float32); ki += 1
        params[f"bn{li}_var"] = jnp.ones((h,), jnp.float32) + 0.01 * jax.random.uniform(
            ks[ki], (h,), jnp.float32); ki += 1
    return params


def _fold_bn(linear_bias, gamma, beta, mean, var):
    """Fold Linear bias + eval-mode BatchNorm1d into one scale/shift pair."""
    scale = gamma / jnp.sqrt(var + BN_EPS)                       # (H,)
    shift = beta + (linear_bias - mean) * scale                  # (H,)
    return scale.reshape(1, -1), shift.reshape(1, -1)


def mlp3_forward(x, params, tile_b=TILE_B):
    """x: (B, 17, 17) or (B, 1, 17, 17) float32 -> logits (B, n_classes)."""
    B = x.shape[0]
    x_flat = x.reshape(B, -1).astype(jnp.float32)                # Flatten
    assert x_flat.shape[1] == IN_DIM

    # -- fold eval-mode BN into per-feature scale/shift, then scale into W --
    s1, t1 = _fold_bn(params["b1"], params["bn1_gamma"], params["bn1_beta"],
                      params["bn1_mean"], params["bn1_var"])
    s2, t2 = _fold_bn(params["b2"], params["bn2_gamma"], params["bn2_beta"],
                      params["bn2_mean"], params["bn2_var"])
    w1 = params["w1"] * s1                                       # (289, 512)
    w2 = params["w2"] * s2                                       # (512, 512)
    w3 = params["w3"]                                            # (512, 2)

    # -- zero-pad to hardware-friendly shapes --
    tb = min(tile_b, _round_up(B, 8))                            # sublane mult of 8
    b_pad = _round_up(B, tb)
    x_p = jnp.pad(x_flat, ((0, b_pad - B), (0, K_PAD - IN_DIM)))
    w1_p = jnp.pad(w1, ((0, K_PAD - IN_DIM), (0, 0)))
    w3_p = jnp.pad(w3, ((0, 0), (0, N_PAD - N_CLASSES)))
    b3_p = jnp.pad(params["b3"], (0, N_PAD - N_CLASSES)).reshape(1, N_PAD)

    # bf16 matmul operands (f32 accumulation in-kernel); shifts stay f32.
    x_bf = x_p.astype(jnp.bfloat16)
    w1_bf = w1_p.astype(jnp.bfloat16)
    w2_bf = w2.astype(jnp.bfloat16)
    w3_bf = w3_p.astype(jnp.bfloat16)

    grid = (b_pad // tb,)
    resident = lambda shape: pl.BlockSpec(shape, lambda i: tuple(0 for _ in shape))

    out = pl.pallas_call(
        mlp3_kernel,
        out_shape=jax.ShapeDtypeStruct((b_pad, N_PAD), jnp.float32),
        grid=grid,
        in_specs=[
            pl.BlockSpec((tb, K_PAD), lambda i: (i, 0)),         # x (batch-tiled)
            resident((K_PAD, HIDDEN[0])),                        # w1
            resident((1, HIDDEN[0])),                            # t1
            resident((HIDDEN[0], HIDDEN[1])),                    # w2
            resident((1, HIDDEN[1])),                            # t2
            resident((HIDDEN[1], N_PAD)),                        # w3
            resident((1, N_PAD)),                                # b3
        ],
        out_specs=pl.BlockSpec((tb, N_PAD), lambda i: (i, 0)),
        compiler_params=pltpu.CompilerParams(
            dimension_semantics=("parallel",),
            vmem_limit_bytes=16 << 20,
        ),
    )(x_bf, w1_bf, t1, w2_bf, t2, w3_bf, b3_p)

    return out[:B, :N_CLASSES]


def mlp3_reference(x, params):
    """Pure-JAX f32 reference for correctness checking."""
    B = x.shape[0]
    h = x.reshape(B, -1).astype(jnp.float32)
    for li in (1, 2):
        h = h @ params[f"w{li}"] + params[f"b{li}"]
        g, b = params[f"bn{li}_gamma"], params[f"bn{li}_beta"]
        m, v = params[f"bn{li}_mean"], params[f"bn{li}_var"]
        h = (h - m) / jnp.sqrt(v + BN_EPS) * g + b
        h = jnp.where(h > 0, h, LEAKY_SLOPE * h)
    return h @ params["w3"] + params["b3"]


if __name__ == "__main__":
    key = jax.random.PRNGKey(0)
    k_param, k_x = jax.random.split(key)
    params = init_params(k_param)

    B = 4
    x = jax.random.normal(k_x, (B, 17, 17), jnp.float32)

    logits = mlp3_forward(x, params)
    jax.block_until_ready(logits)

    ref = mlp3_reference(x, params)
    assert logits.shape == (B, N_CLASSES)
    # bf16 matmul operands (f32 accumulation) -> relaxed tolerance vs f32 ref.
    assert jnp.allclose(logits, ref, atol=5e-2, rtol=5e-2), (
        f"max abs diff {jnp.max(jnp.abs(logits - ref))}")

    print("KERNEL_OK")
</pallas_src>

<mosaic_0001>
module attributes {stable_mosaic.version = 11 : i64} {
  func.func @mlp3_kernel(%arg0: i32, %arg1: memref<8x384xbf16, #tpu.memory_space<vmem>>, %arg2: memref<384x512xbf16, #tpu.memory_space<vmem>>, %arg3: memref<1x512xf32, #tpu.memory_space<vmem>>, %arg4: memref<512x512xbf16, #tpu.memory_space<vmem>>, %arg5: memref<1x512xf32, #tpu.memory_space<vmem>>, %arg6: memref<512x128xbf16, #tpu.memory_space<vmem>>, %arg7: memref<1x128xf32, #tpu.memory_space<vmem>>, %arg8: memref<8x128xf32, #tpu.memory_space<vmem>>) attributes {dimension_semantics = [#tpu.dimension_semantics<parallel>], iteration_bounds = array<i64: 1>, scalar_prefetch = 0 : i64, scratch_operands = 0 : i64, tpu.core_type = #tpu.core_type<tc>, window_params = [{transform_indices = @transform_0, window_bounds = array<i64: 8, 384>}, {pipeline_mode = #tpu.pipeline_mode<synchronous>, transform_indices = @transform_1, window_bounds = array<i64: 384, 512>}, {pipeline_mode = #tpu.pipeline_mode<synchronous>, transform_indices = @transform_2, window_bounds = array<i64: 1, 512>}, {pipeline_mode = #tpu.pipeline_mode<synchronous>, transform_indices = @transform_3, window_bounds = array<i64: 512, 512>}, {pipeline_mode = #tpu.pipeline_mode<synchronous>, transform_indices = @transform_4, window_bounds = array<i64: 1, 512>}, {pipeline_mode = #tpu.pipeline_mode<synchronous>, transform_indices = @transform_5, window_bounds = array<i64: 512, 128>}, {pipeline_mode = #tpu.pipeline_mode<synchronous>, transform_indices = @transform_6, window_bounds = array<i64: 1, 128>}, {transform_indices = @transform_7, window_bounds = array<i64: 8, 128>}]} {
    %c0 = arith.constant 0 : index
    %c0_0 = arith.constant 0 : index
    %0 = vector.load %arg1[%c0, %c0_0] : memref<8x384xbf16, #tpu.memory_space<vmem>>, vector<8x384xbf16>
    %c0_1 = arith.constant 0 : index
    %c0_2 = arith.constant 0 : index
    %1 = vector.load %arg2[%c0_1, %c0_2] : memref<384x512xbf16, #tpu.memory_space<vmem>>, vector<384x512xbf16>
    %cst = arith.constant dense<0.000000e+00> : vector<8x512xf32>
    %2 = tpu.matmul %0, %1, %cst {dimension_numbers = #tpu.dot_dimension_numbers<[1], [0], [0], [1], [0, 0, 1, 1], [], []>} : vector<8x384xbf16>, vector<384x512xbf16>, vector<8x512xf32> -> vector<8x512xf32>
    %c0_3 = arith.constant 0 : index
    %c0_4 = arith.constant 0 : index
    %3 = vector.load %arg3[%c0_3, %c0_4] : memref<1x512xf32, #tpu.memory_space<vmem>>, vector<1x512xf32>
    %4 = vector.broadcast %3 : vector<1x512xf32> to vector<8x512xf32>
    %5 = arith.addf %2, %4 : vector<8x512xf32>
    %cst_5 = arith.constant 0.000000e+00 : f32
    %6 = vector.broadcast %cst_5 : f32 to vector<8x512xf32>
    %7 = arith.cmpf ogt, %5, %6 : vector<8x512xf32>
    %cst_6 = arith.constant 0.00999999977 : f32
    %8 = vector.broadcast %cst_6 : f32 to vector<8x512xf32>
    %9 = arith.mulf %8, %5 : vector<8x512xf32>
    %10 = arith.select %7, %5, %9 : vector<8x512xi1>, vector<8x512xf32>
    %11 = arith.truncf %10 : vector<8x512xf32> to vector<8x512xbf16>
    %c0_7 = arith.constant 0 : index
    %c0_8 = arith.constant 0 : index
    %12 = vector.load %arg4[%c0_7, %c0_8] : memref<512x512xbf16, #tpu.memory_space<vmem>>, vector<512x512xbf16>
    %cst_9 = arith.constant dense<0.000000e+00> : vector<8x512xf32>
    %13 = tpu.matmul %11, %12, %cst_9 {dimension_numbers = #tpu.dot_dimension_numbers<[1], [0], [0], [1], [0, 0, 1, 1], [], []>} : vector<8x512xbf16>, vector<512x512xbf16>, vector<8x512xf32> -> vector<8x512xf32>
    %c0_10 = arith.constant 0 : index
    %c0_11 = arith.constant 0 : index
    %14 = vector.load %arg5[%c0_10, %c0_11] : memref<1x512xf32, #tpu.memory_space<vmem>>, vector<1x512xf32>
    %15 = vector.broadcast %14 : vector<1x512xf32> to vector<8x512xf32>
    %16 = arith.addf %13, %15 : vector<8x512xf32>
    %cst_12 = arith.constant 0.000000e+00 : f32
    %17 = vector.broadcast %cst_12 : f32 to vector<8x512xf32>
    %18 = arith.cmpf ogt, %16, %17 : vector<8x512xf32>
    %cst_13 = arith.constant 0.00999999977 : f32
    %19 = vector.broadcast %cst_13 : f32 to vector<8x512xf32>
    %20 = arith.mulf %19, %16 : vector<8x512xf32>
    %21 = arith.select %18, %16, %20 : vector<8x512xi1>, vector<8x512xf32>
    %22 = arith.truncf %21 : vector<8x512xf32> to vector<8x512xbf16>
    %c0_14 = arith.constant 0 : index
    %c0_15 = arith.constant 0 : index
    %23 = vector.load %arg6[%c0_14, %c0_15] : memref<512x128xbf16, #tpu.memory_space<vmem>>, vector<512x128xbf16>
    %cst_16 = arith.constant dense<0.000000e+00> : vector<8x128xf32>
    %24 = tpu.matmul %22, %23, %cst_16 {dimension_numbers = #tpu.dot_dimension_numbers<[1], [0], [0], [1], [0, 0, 1, 1], [], []>} : vector<8x512xbf16>, vector<512x128xbf16>, vector<8x128xf32> -> vector<8x128xf32>
    %c0_17 = arith.constant 0 : index
    %c0_18 = arith.constant 0 : index
    %25 = vector.load %arg7[%c0_17, %c0_18] : memref<1x128xf32, #tpu.memory_space<vmem>>, vector<1x128xf32>
    %26 = vector.broadcast %25 : vector<1x128xf32> to vector<8x128xf32>
    %27 = arith.addf %24, %26 : vector<8x128xf32>
    %c0_19 = arith.constant 0 : index
    %c0_20 = arith.constant 0 : index
    %28 = vector.load %arg8[%c0_19, %c0_20] : memref<8x128xf32, #tpu.memory_space<vmem>>, vector<8x128xf32>
    tpu.vector_store %arg8[%c0_19, %c0_20], %27 {strides = array<i32>} : memref<8x128xf32, #tpu.memory_space<vmem>>, vector<8x128xf32>,
    return
  }
  func.func @transform_0(%arg0: i32) -> (i32, i32) {
    %c0_i32 = arith.constant 0 : i32
    %c0_i32_0 = arith.constant 0 : i32
    return %arg0, %c0_i32 : i32, i32
  }
  func.func @transform_1(%arg0: i32) -> (i32, i32) {
    %c0_i32 = arith.constant 0 : i32
    %c0_i32_0 = arith.constant 0 : i32
    %c0_i32_1 = arith.constant 0 : i32
    return %c0_i32, %c0_i32_0 : i32, i32
  }
  func.func @transform_2(%arg0: i32) -> (i32, i32) {
    %c0_i32 = arith.constant 0 : i32
    %c0_i32_0 = arith.constant 0 : i32
    %c0_i32_1 = arith.constant 0 : i32
    return %c0_i32, %c0_i32_0 : i32, i32
  }
  func.func @transform_3(%arg0: i32) -> (i32, i32) {
    %c0_i32 = arith.constant 0 : i32
    %c0_i32_0 = arith.constant 0 : i32
    %c0_i32_1 = arith.constant 0 : i32
    return %c0_i32, %c0_i32_0 : i32, i32
  }
  func.func @transform_4(%arg0: i32) -> (i32, i32) {
    %c0_i32 = arith.constant 0 : i32
    %c0_i32_0 = arith.constant 0 : i32
    %c0_i32_1 = arith.constant 0 : i32
    return %c0_i32, %c0_i32_0 : i32, i32
  }
  func.func @transform_5(%arg0: i32) -> (i32, i32) {
    %c0_i32 = arith.constant 0 : i32
    %c0_i32_0 = arith.constant 0 : i32
    %c0_i32_1 = arith.constant 0 : i32
    return %c0_i32, %c0_i32_0 : i32, i32
  }
  func.func @transform_6(%arg0: i32) -> (i32, i32) {
    %c0_i32 = arith.constant 0 : i32
    %c0_i32_0 = arith.constant 0 : i32
    %c0_i32_1 = arith.constant 0 : i32
    return %c0_i32, %c0_i32_0 : i32, i32
  }
  func.func @transform_7(%arg0: i32) -> (i32, i32) {
    %c0_i32 = arith.constant 0 : i32
    %c0_i32_0 = arith.constant 0 : i32
    return %arg0, %c0_i32 : i32, i32
  }
}

</mosaic_0001>

<llo_original>
// kernel: tpu_custom_call.1
$region0: #{tpu_custom_call.1}
  #allocation0 [shape = 'u32[]', space=smem, size = 0x4, offset = 0x4, fixed_abs, tag = 'smem constant byte address 0x4 - core index']
  #allocation1 [shape = 'u32[144,128]{1,0:T(1,128)}', space=vmem, size = 0x12000, scoped, tag = 'internal scratch']
  %s0 = inlined_call_operand.hbm [shape: bf16[8,384], index: 0, kind: input, shape index: {}]
  %s1 = inlined_call_operand.hbm [shape: bf16[384,512], index: 1, kind: input, shape index: {}]
  %s2 = inlined_call_operand.vmem [shape: f32[1,512], index: 2, kind: input, shape index: {}]
  %s3 = inlined_call_operand.hbm [shape: bf16[512,512], index: 3, kind: input, shape index: {}]
  %s4 = inlined_call_operand.vmem [shape: f32[1,512], index: 4, kind: input, shape index: {}]
  %s5 = inlined_call_operand.hbm [shape: bf16[512,128], index: 5, kind: input, shape index: {}]
  %s6 = inlined_call_operand.vmem [shape: f32[1,128], index: 6, kind: input, shape index: {}]
  %s7 = inlined_call_operand.hbm [shape: f32[8,128], index: 7, kind: output, shape index: {}]
  %s8 = sld [smem:[#allocation0]]
  $region54: #{tpu_custom_call.1} parent=0
    _
  %s10 = ssub.s32 1, %s8
  %s11 = scalar_select 0, %s10, %s8
  $region1: #{tpu_custom_call.1} parent=0
    #allocation2 [shape = 'u8[6144]{0}', space=vmem, size = 0x1800, scoped, tag = 'input window, operand 0, single buffered']
    #allocation3 [shape = 's32[1]{0}', space=sflag, size = 0x4, scoped, tag = 'scoped memory for tpu_custom_call.1']
    #allocation4 [shape = 's32[1]{0}', space=sflag, size = 0x4, scoped, tag = 'scoped memory for tpu_custom_call.1']
    #allocation5 [shape = 'u8[393216]{0}', space=vmem, size = 0x60000, scoped, tag = 'input window, operand 1, single buffered']
    #allocation6 [shape = 's32[1]{0}', space=sflag, size = 0x4, scoped, tag = 'scoped memory for tpu_custom_call.1']
    #allocation7 [shape = 'u8[524288]{0}', space=vmem, size = 0x80000, scoped, tag = 'input window, operand 3, single buffered']
    #allocation8 [shape = 'u8[131072]{0}', space=vmem, size = 0x20000, scoped, tag = 'input window, operand 5, single buffered']
    #allocation9 [shape = 's32[1]{0}', space=sflag, size = 0x4, scoped, tag = 'scoped memory for tpu_custom_call.1']
    #allocation10 [shape = 'u8[4096]{0}', space=vmem, size = 0x1000, scoped, tag = 'output window, operand 0, single buffered']
    %12 = vsyncpa [#allocation3], 0
    %13 = vsyncpa [#allocation6], 0
    %14 = vsyncpa [#allocation9], 0
    %15 = vsyncpa [#allocation4], 0
    // Predicated region
    $region2: #{tpu_custom_call.1} parent=1 // pred_check
      _
    $region3: #{tpu_custom_call.1} parent=1 // pred_check_branch
      %17 = sbr.rel (0) target = $region5
    $region4: #{tpu_custom_call.1} parent=1 // pred_region
      %s19 = ssub.s32 192, 192
      %20 = vsyncadd [#allocation3], %s19
      %s22 = sshll.u32 [#allocation2], 4
      %s23 = int_to_ptr.vmem [resolvable:$true] %s22
      %25 = dma.hbm_to_vmem [thread:$0]  %s0, 192, %s23, [#allocation3]
    $region5: #{tpu_custom_call.1} parent=1 // pred_fallthru
      _
    // Predicated region
    $region6: #{tpu_custom_call.1} parent=1 // pred_check
      _
    $region7: #{tpu_custom_call.1} parent=1 // pred_check_branch
      %27 = sbr.rel (0) target = $region9
    $region8: #{tpu_custom_call.1} parent=1 // pred_region
      %s29 = ssub.s32 12288, 12288
      %30 = vsyncadd [#allocation6], %s29
      %s31 = sshll.u32 [#allocation5], 4
      %s32 = int_to_ptr.vmem [resolvable:$true] %s31
      %37 = dma.hbm_to_vmem [thread:$0]  %s1, 12288, %s32, [#allocation6], 256, 256, 16
    $region9: #{tpu_custom_call.1} parent=1 // pred_fallthru
      _
    // Predicated region
    $region10: #{tpu_custom_call.1} parent=1 // pred_check
      _
    $region11: #{tpu_custom_call.1} parent=1 // pred_check_branch
      %39 = sbr.rel (0) target = $region13
    $region12: #{tpu_custom_call.1} parent=1 // pred_region
      _
    $region13: #{tpu_custom_call.1} parent=1 // pred_fallthru
      _
    // Predicated region
    $region14: #{tpu_custom_call.1} parent=1 // pred_check
      _
    $region15: #{tpu_custom_call.1} parent=1 // pred_check_branch
      %41 = sbr.rel (0) target = $region17
    $region16: #{tpu_custom_call.1} parent=1 // pred_region
      %s43 = ssub.s32 16384, 16384
      %44 = vsyncadd [#allocation6], %s43
      %s45 = sshll.u32 [#allocation7], 4
      %s46 = int_to_ptr.vmem [resolvable:$true] %s45
      %51 = dma.hbm_to_vmem [thread:$0]  %s3, 16384, %s46, [#allocation6], 256, 256, 16
    $region17: #{tpu_custom_call.1} parent=1 // pred_fallthru
      _
    // Predicated region
    $region18: #{tpu_custom_call.1} parent=1 // pred_check
      _
    $region19: #{tpu_custom_call.1} parent=1 // pred_check_branch
      %53 = sbr.rel (0) target = $region21
    $region20: #{tpu_custom_call.1} parent=1 // pred_region
      _
    $region21: #{tpu_custom_call.1} parent=1 // pred_fallthru
      _
    // Predicated region
    $region22: #{tpu_custom_call.1} parent=1 // pred_check
      _
    $region23: #{tpu_custom_call.1} parent=1 // pred_check_branch
      %55 = sbr.rel (0) target = $region25
    $region24: #{tpu_custom_call.1} parent=1 // pred_region
      %s57 = ssub.s32 4096, 4096
      %58 = vsyncadd [#allocation9], %s57
      %s59 = sshll.u32 [#allocation8], 4
      %s60 = int_to_ptr.vmem [resolvable:$true] %s59
      %65 = dma.hbm_to_vmem [thread:$0]  %s5, 4096, %s60, [#allocation9], 64, 64, 4
    $region25: #{tpu_custom_call.1} parent=1 // pred_fallthru
      _
    // Predicated region
    $region26: #{tpu_custom_call.1} parent=1 // pred_check
      _
    $region27: #{tpu_custom_call.1} parent=1 // pred_check_branch
      %67 = sbr.rel (0) target = $region29
    $region28: #{tpu_custom_call.1} parent=1 // pred_region
      _
    $region29: #{tpu_custom_call.1} parent=1 // pred_fallthru
      _
    // Predicated region
    $region30: #{tpu_custom_call.1} parent=1 // pred_check
      _
    $region31: #{tpu_custom_call.1} parent=1 // pred_check_branch
      %69 = sbr.rel (0) target = $region33
    $region32: #{tpu_custom_call.1} parent=1 // pred_region
      %70 = dma.done [#allocation3], 192
    $region33: #{tpu_custom_call.1} parent=1 // pred_fallthru
      _
    // Predicated region
    $region34: #{tpu_custom_call.1} parent=1 // pred_check
      _
    $region35: #{tpu_custom_call.1} parent=1 // pred_check_branch
      %72 = sbr.rel (0) target = $region37
    $region36: #{tpu_custom_call.1} parent=1 // pred_region
      %73 = dma.done [#allocation6], 12288
    $region37: #{tpu_custom_call.1} parent=1 // pred_fallthru
      _
    // Predicated region
    $region38: #{tpu_custom_call.1} parent=1 // pred_check
      _
    $region39: #{tpu_custom_call.1} parent=1 // pred_check_branch
      %75 = sbr.rel (0) target = $region41
    $region40: #{tpu_custom_call.1} parent=1 // pred_region
      %76 = dma.done [#allocation6], 16384
    $region41: #{tpu_custom_call.1} parent=1 // pred_fallthru
      _
    // Predicated region
    $region42: #{tpu_custom_call.1} parent=1 // pred_check
      _
    $region43: #{tpu_custom_call.1} parent=1 // pred_check_branch
      %78 = sbr.rel (0) target = $region45
    $region44: #{tpu_custom_call.1} parent=1 // pred_region
      %79 = dma.done [#allocation9], 4096
    $region45: #{tpu_custom_call.1} parent=1 // pred_fallthru
      _
    %v81 = vld [vmem:[#allocation2] sm:$0xff]
    %v82 = vld [vmem:[#allocation2 + $0x8] sm:$0xf]
    %v83 = vld [vmem:[#allocation5] sm:$0xff]
    %v84 = vld [vmem:[#allocation5 + $0x8] sm:$0xff]
    %v85 = vld [vmem:[#allocation5 + $0x10] sm:$0xff]
    %v86 = vld [vmem:[#allocation5 + $0x18] sm:$0xff]
    %v87 = vld [vmem:[#allocation5 + $0x20] sm:$0xff]
    %v88 = vld [vmem:[#allocation5 + $0x28] sm:$0xff]
    %v89 = vld [vmem:[#allocation5 + $0x30] sm:$0xff]
    %v90 = vld [vmem:[#allocation5 + $0x38] sm:$0xff]
    %v91 = vld [vmem:[#allocation5 + $0x40] sm:$0xff]
    %v92 = vld [vmem:[#allocation5 + $0x48] sm:$0xff]
    %v93 = vld [vmem:[#allocation5 + $0x50] sm:$0xff]
    %v94 = vld [vmem:[#allocation5 + $0x58] sm:$0xff]
    %v95 = vld [vmem:[#allocation5 + $0x60] sm:$0xff]
    %v96 = vld [vmem:[#allocation5 + $0x68] sm:$0xff]
    %v97 = vld [vmem:[#allocation5 + $0x70] sm:$0xff]
    %v98 = vld [vmem:[#allocation5 + $0x78] sm:$0xff]
    %v99 = vld [vmem:[#allocation5 + $0x80] sm:$0xff]
    %v100 = vld [vmem:[#allocation5 + $0x88] sm:$0xff]
    %v101 = vld [vmem:[#allocation5 + $0x90] sm:$0xff]
    %v102 = vld [vmem:[#allocation5 + $0x98] sm:$0xff]
    %v103 = vld [vmem:[#allocation5 + $0xa0] sm:$0xff]
    %v104 = vld [vmem:[#allocation5 + $0xa8] sm:$0xff]
    %v105 = vld [vmem:[#allocation5 + $0xb0] sm:$0xff]
    %v106 = vld [vmem:[#allocation5 + $0xb8] sm:$0xff]
    %v107 = vld [vmem:[#allocation5 + $0xc0] sm:$0xff]
    %v108 = vld [vmem:[#allocation5 + $0xc8] sm:$0xff]
    %v109 = vld [vmem:[#allocation5 + $0xd0] sm:$0xff]
    %v110 = vld [vmem:[#allocation5 + $0xd8] sm:$0xff]
    %v111 = vld [vmem:[#allocation5 + $0xe0] sm:$0xff]
    %v112 = vld [vmem:[#allocation5 + $0xe8] sm:$0xff]
    %v113 = vld [vmem:[#allocation5 + $0xf0] sm:$0xff]
    %v114 = vld [vmem:[#allocation5 + $0xf8] sm:$0xff]
    %v115 = vld [vmem:[#allocation5 + $0x100] sm:$0xff]
    %v116 = vld [vmem:[#allocation5 + $0x108] sm:$0xff]
    %v117 = vld [vmem:[#allocation5 + $0x110] sm:$0xff]
    %v118 = vld [vmem:[#allocation5 + $0x118] sm:$0xff]
    %v119 = vld [vmem:[#allocation5 + $0x120] sm:$0xff]
    %v120 = vld [vmem:[#allocation5 + $0x128] sm:$0xff]
    %v121 = vld [vmem:[#allocation5 + $0x130] sm:$0xff]
    %v122 = vld [vmem:[#allocation5 + $0x138] sm:$0xff]
    %v123 = vld [vmem:[#allocation5 + $0x140] sm:$0xff]
    %v124 = vld [vmem:[#allocation5 + $0x148] sm:$0xff]
    %v125 = vld [vmem:[#allocation5 + $0x150] sm:$0xff]
    %v126 = vld [vmem:[#allocation5 + $0x158] sm:$0xff]
    %v127 = vld [vmem:[#allocation5 + $0x160] sm:$0xff]
    %v128 = vld [vmem:[#allocation5 + $0x168] sm:$0xff]
    %v129 = vld [vmem:[#allocation5 + $0x170] sm:$0xff]
    %v130 = vld [vmem:[#allocation5 + $0x178] sm:$0xff]
    %v131 = vld [vmem:[#allocation5 + $0x180] sm:$0xff]
    %v132 = vld [vmem:[#allocation5 + $0x188] sm:$0xff]
    %v133 = vld [vmem:[#allocation5 + $0x190] sm:$0xff]
    %v134 = vld [vmem:[#allocation5 + $0x198] sm:$0xff]
    %v135 = vld [vmem:[#allocation5 + $0x1a0] sm:$0xff]
    %v136 = vld [vmem:[#allocation5 + $0x1a8] sm:$0xff]
    %v137 = vld [vmem:[#allocation5 + $0x1b0] sm:$0xff]
    %v138 = vld [vmem:[#allocation5 + $0x1b8] sm:$0xff]
    %v139 = vld [vmem:[#allocation5 + $0x1c0] sm:$0xff]
    %v140 = vld [vmem:[#allocation5 + $0x1c8] sm:$0xff]
    %v141 = vld [vmem:[#allocation5 + $0x1d0] sm:$0xff]
    %v142 = vld [vmem:[#allocation5 + $0x1d8] sm:$0xff]
    %v143 = vld [vmem:[#allocation5 + $0x1e0] sm:$0xff]
    %v144 = vld [vmem:[#allocation5 + $0x1e8] sm:$0xff]
    %v145 = vld [vmem:[#allocation5 + $0x1f0] sm:$0xff]
    %v146 = vld [vmem:[#allocation5 + $0x1f8] sm:$0xff]
    %v147 = vld [vmem:[#allocation5 + $0x200] sm:$0xff]
    %v148 = vld [vmem:[#allocation5 + $0x208] sm:$0xff]
    %v149 = vld [vmem:[#allocation5 + $0x210] sm:$0xff]
    %v150 = vld [vmem:[#allocation5 + $0x218] sm:$0xff]
    %v151 = vld [vmem:[#allocation5 + $0x220] sm:$0xff]
    %v152 = vld [vmem:[#allocation5 + $0x228] sm:$0xff]
    %v153 = vld [vmem:[#allocation5 + $0x230] sm:$0xff]
    %v154 = vld [vmem:[#allocation5 + $0x238] sm:$0xff]
    %v155 = vld [vmem:[#allocation5 + $0x240] sm:$0xff]
    %v156 = vld [vmem:[#allocation5 + $0x248] sm:$0xff]
    %v157 = vld [vmem:[#allocation5 + $0x250] sm:$0xff]
    %v158 = vld [vmem:[#allocation5 + $0x258] sm:$0xff]
    %v159 = vld [vmem:[#allocation5 + $0x260] sm:$0xff]
    %v160 = vld [vmem:[#allocation5 + $0x268] sm:$0xff]
    %v161 = vld [vmem:[#allocation5 + $0x270] sm:$0xff]
    %v162 = vld [vmem:[#allocation5 + $0x278] sm:$0xff]
    %v163 = vld [vmem:[#allocation5 + $0x280] sm:$0xff]
    %v164 = vld [vmem:[#allocation5 + $0x288] sm:$0xff]
    %v165 = vld [vmem:[#allocation5 + $0x290] sm:$0xff]
    %v166 = vld [vmem:[#allocation5 + $0x298] sm:$0xff]
    %v167 = vld [vmem:[#allocation5 + $0x2a0] sm:$0xff]
    %v168 = vld [vmem:[#allocation5 + $0x2a8] sm:$0xff]
    %v169 = vld [vmem:[#allocation5 + $0x2b0] sm:$0xff]
    %v170 = vld [vmem:[#allocation5 + $0x2b8] sm:$0xff]
    %v171 = vld [vmem:[#allocation5 + $0x2c0] sm:$0xff]
    %v172 = vld [vmem:[#allocation5 + $0x2c8] sm:$0xff]
    %v173 = vld [vmem:[#allocation5 + $0x2d0] sm:$0xff]
    %v174 = vld [vmem:[#allocation5 + $0x2d8] sm:$0xff]
    %v175 = vld [vmem:[#allocation5 + $0x2e0] sm:$0xff]
    %v176 = vld [vmem:[#allocation5 + $0x2e8] sm:$0xff]
    %v177 = vld [vmem:[#allocation5 + $0x2f0] sm:$0xff]
    %v178 = vld [vmem:[#allocation5 + $0x2f8] sm:$0xff]
    %v179 = vld [vmem:[%s2] sm:$0xf]
    %v181 = vlaneseq
    %v182 = vshrl.u32 %v181, 7
    %v183 = vsub.s32 0, %v182
    %v184 = vrot.slane %v179, %v183
    %v185 = vlaneseq
    %v186 = vshrl.u32 %v185, 7
    %v187 = vsub.s32 1, %v186
    %v188 = vrot.slane %v179, %v187
    %v189 = vlaneseq
    %v190 = vshrl.u32 %v189, 7
    %v191 = vsub.s32 2, %v190
    %v192 = vrot.slane %v179, %v191
    %v193 = vlaneseq
    %v194 = vshrl.u32 %v193, 7
    %v195 = vsub.s32 3, %v194
    %v196 = vrot.slane %v179, %v195
    %v203 = vunpack.c.l.b16 %v81
    %v204 = vunpack.c.h.b16 %v81
    %v205 = vunpack.c.l.b16 %v82
    %v206 = vpack.c.b16 %v203, %v203
    %v207 = vpack.c.b16 %v204, %v204
    %v208 = vpack.c.b16 %v205, %v205
    %v308 = vunpack.c.l.b16 %v83
    %v309 = vunpack.c.h.b16 %v83
    %v310 = vunpack.c.l.b16 %v84
    %v311 = vunpack.c.h.b16 %v84
    %v312 = vunpack.c.l.b16 %v85
    %v313 = vunpack.c.h.b16 %v85
    %v314 = vunpack.c.l.b16 %v86
    %v315 = vunpack.c.h.b16 %v86
    %v316 = vunpack.c.l.b16 %v87
    %v317 = vunpack.c.h.b16 %v87
    %v318 = vunpack.c.l.b16 %v88
    %v319 = vunpack.c.h.b16 %v88
    %v320 = vunpack.c.l.b16 %v89
    %v321 = vunpack.c.h.b16 %v89
    %v322 = vunpack.c.l.b16 %v90
    %v323 = vunpack.c.h.b16 %v90
    %v324 = vunpack.c.l.b16 %v91
    %v325 = vunpack.c.h.b16 %v91
    %v326 = vunpack.c.l.b16 %v92
    %v327 = vunpack.c.h.b16 %v92
    %v328 = vunpack.c.l.b16 %v93
    %v329 = vunpack.c.h.b16 %v93
    %v330 = vunpack.c.l.b16 %v94
    %v331 = vunpack.c.h.b16 %v94
    %v332 = vunpack.c.l.b16 %v95
    %v333 = vunpack.c.h.b16 %v95
    %v334 = vunpack.c.l.b16 %v96
    %v335 = vunpack.c.h.b16 %v96
    %v336 = vunpack.c.l.b16 %v97
    %v337 = vunpack.c.h.b16 %v97
    %v338 = vunpack.c.l.b16 %v98
    %v339 = vunpack.c.h.b16 %v98
    %v340 = vunpack.c.l.b16 %v99
    %v341 = vunpack.c.h.b16 %v99
    %v342 = vunpack.c.l.b16 %v100
    %v343 = vunpack.c.h.b16 %v100
    %v344 = vunpack.c.l.b16 %v101
    %v345 = vunpack.c.h.b16 %v101
    %v346 = vunpack.c.l.b16 %v102
    %v347 = vunpack.c.h.b16 %v102
    %v348 = vunpack.c.l.b16 %v103
    %v349 = vunpack.c.h.b16 %v103
    %v350 = vunpack.c.l.b16 %v104
    %v351 = vunpack.c.h.b16 %v104
    %v352 = vunpack.c.l.b16 %v105
    %v353 = vunpack.c.h.b16 %v105
    %v354 = vunpack.c.l.b16 %v106
    %v355 = vunpack.c.h.b16 %v106
    %v356 = vunpack.c.l.b16 %v107
    %v357 = vunpack.c.h.b16 %v107
    %v358 = vunpack.c.l.b16 %v108
    %v359 = vunpack.c.h.b16 %v108
    %v360 = vunpack.c.l.b16 %v109
    %v361 = vunpack.c.h.b16 %v109
    %v362 = vunpack.c.l.b16 %v110
    %v363 = vunpack.c.h.b16 %v110
    %v364 = vunpack.c.l.b16 %v111
    %v365 = vunpack.c.h.b16 %v111
    %v366 = vunpack.c.l.b16 %v112
    %v367 = vunpack.c.h.b16 %v112
    %v368 = vunpack.c.l.b16 %v113
    %v369 = vunpack.c.h.b16 %v113
    %v370 = vunpack.c.l.b16 %v114
    %v371 = vunpack.c.h.b16 %v114
    %v372 = vunpack.c.l.b16 %v115
    %v373 = vunpack.c.h.b16 %v115
    %v374 = vunpack.c.l.b16 %v116
    %v375 = vunpack.c.h.b16 %v116
    %v376 = vunpack.c.l.b16 %v117
    %v377 = vunpack.c.h.b16 %v117
    %v378 = vunpack.c.l.b16 %v118
    %v379 = vunpack.c.h.b16 %v118
    %v380 = vunpack.c.l.b16 %v119
    %v381 = vunpack.c.h.b16 %v119
    %v382 = vunpack.c.l.b16 %v120
    %v383 = vunpack.c.h.b16 %v120
    %v384 = vunpack.c.l.b16 %v121
    %v385 = vunpack.c.h.b16 %v121
    %v386 = vunpack.c.l.b16 %v122
    %v387 = vunpack.c.h.b16 %v122
    %v388 = vunpack.c.l.b16 %v123
    %v389 = vunpack.c.h.b16 %v123
    %v390 = vunpack.c.l.b16 %v124
    %v391 = vunpack.c.h.b16 %v124
    %v392 = vunpack.c.l.b16 %v125
    %v393 = vunpack.c.h.b16 %v125
    %v394 = vunpack.c.l.b16 %v126
    %v395 = vunpack.c.h.b16 %v126
    %v396 = vunpack.c.l.b16 %v127
    %v397 = vunpack.c.h.b16 %v127
    %v398 = vunpack.c.l.b16 %v128
    %v399 = vunpack.c.h.b16 %v128
    %v400 = vunpack.c.l.b16 %v129
    %v401 = vunpack.c.h.b16 %v129
    %v402 = vunpack.c.l.b16 %v130
    %v403 = vunpack.c.h.b16 %v130
    %v404 = vunpack.c.l.b16 %v131
    %v405 = vunpack.c.h.b16 %v131
    %v406 = vunpack.c.l.b16 %v132
    %v407 = vunpack.c.h.b16 %v132
    %v408 = vunpack.c.l.b16 %v133
    %v409 = vunpack.c.h.b16 %v133
    %v410 = vunpack.c.l.b16 %v134
    %v411 = vunpack.c.h.b16 %v134
    %v412 = vunpack.c.l.b16 %v135
    %v413 = vunpack.c.h.b16 %v135
    %v414 = vunpack.c.l.b16 %v136
    %v415 = vunpack.c.h.b16 %v136
    %v416 = vunpack.c.l.b16 %v137
    %v417 = vunpack.c.h.b16 %v137
    %v418 = vunpack.c.l.b16 %v138
    %v419 = vunpack.c.h.b16 %v138
    %v420 = vunpack.c.l.b16 %v139
    %v421 = vunpack.c.h.b16 %v139
    %v422 = vunpack.c.l.b16 %v140
    %v423 = vunpack.c.h.b16 %v140
    %v424 = vunpack.c.l.b16 %v141
    %v425 = vunpack.c.h.b16 %v141
    %v426 = vunpack.c.l.b16 %v142
    %v427 = vunpack.c.h.b16 %v142
    %v428 = vunpack.c.l.b16 %v143
    %v429 = vunpack.c.h.b16 %v143
    %v430 = vunpack.c.l.b16 %v144
    %v431 = vunpack.c.h.b16 %v144
    %v432 = vunpack.c.l.b16 %v145
    %v433 = vunpack.c.h.b16 %v145
    %v434 = vunpack.c.l.b16 %v146
    %v435 = vunpack.c.h.b16 %v146
    %v436 = vunpack.c.l.b16 %v147
    %v437 = vunpack.c.h.b16 %v147
    %v438 = vunpack.c.l.b16 %v148
    %v439 = vunpack.c.h.b16 %v148
    %v440 = vunpack.c.l.b16 %v149
    %v441 = vunpack.c.h.b16 %v149
    %v442 = vunpack.c.l.b16 %v150
    %v443 = vunpack.c.h.b16 %v150
    %v444 = vunpack.c.l.b16 %v151
    %v445 = vunpack.c.h.b16 %v151
    %v446 = vunpack.c.l.b16 %v152
    %v447 = vunpack.c.h.b16 %v152
    %v448 = vunpack.c.l.b16 %v153
    %v449 = vunpack.c.h.b16 %v153
    %v450 = vunpack.c.l.b16 %v154
    %v451 = vunpack.c.h.b16 %v154
    %v452 = vunpack.c.l.b16 %v155
    %v453 = vunpack.c.h.b16 %v155
    %v454 = vunpack.c.l.b16 %v156
    %v455 = vunpack.c.h.b16 %v156
    %v456 = vunpack.c.l.b16 %v157
    %v457 = vunpack.c.h.b16 %v157
    %v458 = vunpack.c.l.b16 %v158
    %v459 = vunpack.c.h.b16 %v158
    %v460 = vunpack.c.l.b16 %v159
    %v461 = vunpack.c.h.b16 %v159
    %v462 = vunpack.c.l.b16 %v160
    %v463 = vunpack.c.h.b16 %v160
    %v464 = vunpack.c.l.b16 %v161
    %v465 = vunpack.c.h.b16 %v161
    %v466 = vunpack.c.l.b16 %v162
    %v467 = vunpack.c.h.b16 %v162
    %v468 = vunpack.c.l.b16 %v163
    %v469 = vunpack.c.h.b16 %v163
    %v470 = vunpack.c.l.b16 %v164
    %v471 = vunpack.c.h.b16 %v164
    %v472 = vunpack.c.l.b16 %v165
    %v473 = vunpack.c.h.b16 %v165
    %v474 = vunpack.c.l.b16 %v166
    %v475 = vunpack.c.h.b16 %v166
    %v476 = vunpack.c.l.b16 %v167
    %v477 = vunpack.c.h.b16 %v167
    %v478 = vunpack.c.l.b16 %v168
    %v479 = vunpack.c.h.b16 %v168
    %v480 = vunpack.c.l.b16 %v169
    %v481 = vunpack.c.h.b16 %v169
    %v482 = vunpack.c.l.b16 %v170
    %v483 = vunpack.c.h.b16 %v170
    %v484 = vunpack.c.l.b16 %v171
    %v485 = vunpack.c.h.b16 %v171
    %v486 = vunpack.c.l.b16 %v172
    %v487 = vunpack.c.h.b16 %v172
    %v488 = vunpack.c.l.b16 %v173
    %v489 = vunpack.c.h.b16 %v173
    %v490 = vunpack.c.l.b16 %v174
    %v491 = vunpack.c.h.b16 %v174
    %v492 = vunpack.c.l.b16 %v175
    %v493 = vunpack.c.h.b16 %v175
    %v494 = vunpack.c.l.b16 %v176
    %v495 = vunpack.c.h.b16 %v176
    %v496 = vunpack.c.l.b16 %v177
    %v497 = vunpack.c.h.b16 %v177
    %v498 = vunpack.c.l.b16 %v178
    %v499 = vunpack.c.h.b16 %v178
    %v500 = vpack.c.b16 %v312, %v308
    %v501 = vpack.c.b16 %v313, %v309
    %v502 = vpack.c.b16 %v314, %v310
    %v503 = vpack.c.b16 %v315, %v311
    %v504 = vpack.c.b16 %v320, %v316
    %v505 = vpack.c.b16 %v321, %v317
    %v506 = vpack.c.b16 %v322, %v318
    %v507 = vpack.c.b16 %v323, %v319
    %v508 = vpack.c.b16 %v328, %v324
    %v509 = vpack.c.b16 %v329, %v325
    %v510 = vpack.c.b16 %v330, %v326
    %v511 = vpack.c.b16 %v331, %v327
    %v512 = vpack.c.b16 %v336, %v332
    %v513 = vpack.c.b16 %v337, %v333
    %v514 = vpack.c.b16 %v338, %v334
    %v515 = vpack.c.b16 %v339, %v335
    %v516 = vpack.c.b16 %v344, %v340
    %v517 = vpack.c.b16 %v345, %v341
    %v518 = vpack.c.b16 %v346, %v342
    %v519 = vpack.c.b16 %v347, %v343
    %v520 = vpack.c.b16 %v352, %v348
    %v521 = vpack.c.b16 %v353, %v349
    %v522 = vpack.c.b16 %v354, %v350
    %v523 = vpack.c.b16 %v355, %v351
    %v524 = vpack.c.b16 %v360, %v356
    %v525 = vpack.c.b16 %v361, %v357
    %v526 = vpack.c.b16 %v362, %v358
    %v527 = vpack.c.b16 %v363, %v359
    %v528 = vpack.c.b16 %v368, %v364
    %v529 = vpack.c.b16 %v369, %v365
    %v530 = vpack.c.b16 %v370, %v366
    %v531 = vpack.c.b16 %v371, %v367
    %v532 = vpack.c.b16 %v376, %v372
    %v533 = vpack.c.b16 %v377, %v373
    %v534 = vpack.c.b16 %v378, %v374
    %v535 = vpack.c.b16 %v379, %v375
    %v536 = vpack.c.b16 %v384, %v380
    %v537 = vpack.c.b16 %v385, %v381
    %v538 = vpack.c.b16 %v386, %v382
    %v539 = vpack.c.b16 %v387, %v383
    %v540 = vpack.c.b16 %v392, %v388
    %v541 = vpack.c.b16 %v393, %v389
    %v542 = vpack.c.b16 %v394, %v390
    %v543 = vpack.c.b16 %v395, %v391
    %v544 = vpack.c.b16 %v400, %v396
    %v545 = vpack.c.b16 %v401, %v397
    %v546 = vpack.c.b16 %v402, %v398
    %v547 = vpack.c.b16 %v403, %v399
    %v548 = vpack.c.b16 %v408, %v404
    %v549 = vpack.c.b16 %v409, %v405
    %v550 = vpack.c.b16 %v410, %v406
    %v551 = vpack.c.b16 %v411, %v407
    %v552 = vpack.c.b16 %v416, %v412
    %v553 = vpack.c.b16 %v417, %v413
    %v554 = vpack.c.b16 %v418, %v414
    %v555 = vpack.c.b16 %v419, %v415
    %v556 = vpack.c.b16 %v424, %v420
    %v557 = vpack.c.b16 %v425, %v421
    %v558 = vpack.c.b16 %v426, %v422
    %v559 = vpack.c.b16 %v427, %v423
    %v560 = vpack.c.b16 %v432, %v428
    %v561 = vpack.c.b16 %v433, %v429
    %v562 = vpack.c.b16 %v434, %v430
    %v563 = vpack.c.b16 %v435, %v431
    %v564 = vpack.c.b16 %v440, %v436
    %v565 = vpack.c.b16 %v441, %v437
    %v566 = vpack.c.b16 %v442, %v438
    %v567 = vpack.c.b16 %v443, %v439
    %v568 = vpack.c.b16 %v448, %v444
    %v569 = vpack.c.b16 %v449, %v445
    %v570 = vpack.c.b16 %v450, %v446
    %v571 = vpack.c.b16 %v451, %v447
    %v572 = vpack.c.b16 %v456, %v452
    %v573 = vpack.c.b16 %v457, %v453
    %v574 = vpack.c.b16 %v458, %v454
    %v575 = vpack.c.b16 %v459, %v455
    %v576 = vpack.c.b16 %v464, %v460
    %v577 = vpack.c.b16 %v465, %v461
    %v578 = vpack.c.b16 %v466, %v462
    %v579 = vpack.c.b16 %v467, %v463
    %v580 = vpack.c.b16 %v472, %v468
    %v581 = vpack.c.b16 %v473, %v469
    %v582 = vpack.c.b16 %v474, %v470
    %v583 = vpack.c.b16 %v475, %v471
    %v584 = vpack.c.b16 %v480, %v476
    %v585 = vpack.c.b16 %v481, %v477
    %v586 = vpack.c.b16 %v482, %v478
    %v587 = vpack.c.b16 %v483, %v479
    %v588 = vpack.c.b16 %v488, %v484
    %v589 = vpack.c.b16 %v489, %v485
    %v590 = vpack.c.b16 %v490, %v486
    %v591 = vpack.c.b16 %v491, %v487
    %v592 = vpack.c.b16 %v496, %v492
    %v593 = vpack.c.b16 %v497, %v493
    %v594 = vpack.c.b16 %v498, %v494
    %v595 = vpack.c.b16 %v499, %v495
    %692 = vmatprep.subr.bf16.mxu0 %v501
    %693 = vmatpush1.bf16.msra.mxu0 %v500
    %694 = vmatprep.subr.bf16.mxu0 %v505
    %695 = vmatpush1.bf16.msra.mxu0 %v504
    %696 = vmatprep.subr.bf16.mxu0 %v509
    %697 = vmatpush1.bf16.msra.mxu0 %v508
    %698 = vmatprep.subr.bf16.mxu0 %v513
    %699 = vmatpush1.bf16.msra.mxu0 %v512
    %700 = vmatprep.subr.bf16.mxu0 %v517
    %701 = vmatpush1.bf16.msra.mxu0 %v516
    %702 = vmatprep.subr.bf16.mxu0 %v521
    %703 = vmatpush1.bf16.msra.mxu0 %v520
    %704 = vmatprep.subr.bf16.mxu0 %v525
    %705 = vmatpush1.bf16.msra.mxu0 %v524
    %706 = vmatprep.subr.bf16.mxu0 %v529
    %707 = vmatpush1.bf16.msra.mxu0 %v528
    %708 = vmatprep.subr.bf16.mxu0 %v533
    %709 = vmatpush1.bf16.msra.mxu0 %v532
    %710 = vmatprep.subr.bf16.mxu0 %v537
    %711 = vmatpush1.bf16.msra.mxu0 %v536
    %712 = vmatprep.subr.bf16.mxu0 %v541
    %713 = vmatpush1.bf16.msra.mxu0 %v540
    %714 = vmatprep.subr.bf16.mxu0 %v545
    %715 = vmatpush1.bf16.msra.mxu0 %v544
    %716 = vmatprep.subr.bf16.mxu0 %v549
    %717 = vmatpush1.bf16.msra.mxu0 %v548
    %718 = vmatprep.subr.bf16.mxu0 %v553
    %719 = vmatpush1.bf16.msra.mxu0 %v552
    %720 = vmatprep.subr.bf16.mxu0 %v557
    %721 = vmatpush1.bf16.msra.mxu0 %v556
    %722 = vmatprep.subr.bf16.mxu0 %v561
    %723 = vmatpush1.bf16.msra.mxu0 %v560
    %724 = vmatprep.mubr.bf16.mxu0 %v207
    %725 = vmatmul.mubr.bf16.gmra.mrb[0].mxu0 %v206
    %v726 = vpop.f32.mrb[0].mxu0
    %v727 = vadd.f32 %v184, %v726
    %v728 = vpop.f32.mrb[0].mxu0
    %v729 = vadd.f32 %v188, %v728
    %v730 = vpop.f32.mrb[0].mxu0
    %v731 = vpop.f32.mrb[0].mxu0
    %732 = vdwg.mxu0
    %733 = vmatprep.subr.bf16.mxu0 %v565
    %734 = vmatpush1.bf16.msra.mxu0 %v564
    %735 = vmatprep.subr.bf16.mxu0 %v569
    %736 = vmatpush1.bf16.msra.mxu0 %v568
    %737 = vmatprep.subr.bf16.mxu0 %v573
    %738 = vmatpush1.bf16.msra.mxu0 %v572
    %739 = vmatprep.subr.bf16.mxu0 %v577
    %740 = vmatpush1.bf16.msra.mxu0 %v576
    %741 = vmatprep.subr.bf16.mxu0 %v581
    %742 = vmatpush1.bf16.msra.mxu0 %v580
    %743 = vmatprep.subr.bf16.mxu0 %v585
    %744 = vmatpush1.bf16.msra.mxu0 %v584
    %745 = vmatprep.subr.bf16.mxu0 %v589
    %746 = vmatpush1.bf16.msra.mxu0 %v588
    %747 = vmatprep.subr.bf16.mxu0 %v593
    %748 = vmatpush1.bf16.msra.mxu0 %v592
    %749 = vmatprep.subr.bf16.mxu0 0
    %750 = vmatpush1.bf16.msra.mxu0 0
    %751 = vmatprep.subr.bf16.mxu0 0
    %752 = vmatpush1.bf16.msra.mxu0 0
    %753 = vmatprep.subr.bf16.mxu0 0
    %754 = vmatpush1.bf16.msra.mxu0 0
    %755 = vmatprep.subr.bf16.mxu0 0
    %756 = vmatpush1.bf16.msra.mxu0 0
    %757 = vmatprep.subr.bf16.mxu0 0
    %758 = vmatpush1.bf16.msra.mxu0 0
    %759 = vmatprep.subr.bf16.mxu0 0
    %760 = vmatpush1.bf16.msra.mxu0 0
    %761 = vmatprep.subr.bf16.mxu0 0
    %762 = vmatpush1.bf16.msra.mxu0 0
    %763 = vmatprep.subr.bf16.mxu0 0
    %764 = vmatpush1.bf16.msra.mxu0 0
    %765 = vmatprep.mubr.bf16.mxu0 0
    %766 = vmatmul.mubr.bf16.gmra.mrb[0].mxu0 %v208
    %v767 = vpop.f32.mrb[0].mxu0
    %v768 = vadd.f32 %v727, %v767
    %v769 = vpop.f32.mrb[0].mxu0
    %v770 = vadd.f32 %v729, %v769
    %v771 = vpop.f32.mrb[0].mxu0
    %v772 = vpop.f32.mrb[0].mxu0
    %773 = vdwg.mxu0
    %774 = vmatprep.subr.bf16.mxu0 %v503
    %775 = vmatpush1.bf16.msra.mxu0 %v502
    %776 = vmatprep.subr.bf16.mxu0 %v507
    %777 = vmatpush1.bf16.msra.mxu0 %v506
    %778 = vmatprep.subr.bf16.mxu0 %v511
    %779 = vmatpush1.bf16.msra.mxu0 %v510
    %780 = vmatprep.subr.bf16.mxu0 %v515
    %781 = vmatpush1.bf16.msra.mxu0 %v514
    %782 = vmatprep.subr.bf16.mxu0 %v519
    %783 = vmatpush1.bf16.msra.mxu0 %v518
    %784 = vmatprep.subr.bf16.mxu0 %v523
    %785 = vmatpush1.bf16.msra.mxu0 %v522
    %786 = vmatprep.subr.bf16.mxu0 %v527
    %787 = vmatpush1.bf16.msra.mxu0 %v526
    %788 = vmatprep.subr.bf16.mxu0 %v531
    %789 = vmatpush1.bf16.msra.mxu0 %v530
    %790 = vmatprep.subr.bf16.mxu0 %v535
    %791 = vmatpush1.bf16.msra.mxu0 %v534
    %792 = vmatprep.subr.bf16.mxu0 %v539
    %793 = vmatpush1.bf16.msra.mxu0 %v538
    %794 = vmatprep.subr.bf16.mxu0 %v543
    %795 = vmatpush1.bf16.msra.mxu0 %v542
    %796 = vmatprep.subr.bf16.mxu0 %v547
    %797 = vmatpush1.bf16.msra.mxu0 %v546
    %798 = vmatprep.subr.bf16.mxu0 %v551
    %799 = vmatpush1.bf16.msra.mxu0 %v550
    %800 = vmatprep.subr.bf16.mxu0 %v555
    %801 = vmatpush1.bf16.msra.mxu0 %v554
    %802 = vmatprep.subr.bf16.mxu0 %v559
    %803 = vmatpush1.bf16.msra.mxu0 %v558
    %804 = vmatprep.subr.bf16.mxu0 %v563
    %805 = vmatpush1.bf16.msra.mxu0 %v562
    %806 = vmatprep.mubr.bf16.mxu0 %v207
    %807 = vmatmul.mubr.bf16.gmra.mrb[0].mxu0 %v206
    %v808 = vpop.f32.mrb[0].mxu0
    %v809 = vadd.f32 %v192, %v808
    %v810 = vpop.f32.mrb[0].mxu0
    %v811 = vadd.f32 %v196, %v810
    %v812 = vpop.f32.mrb[0].mxu0
    %v813 = vpop.f32.mrb[0].mxu0
    %814 = vdwg.mxu0
    %815 = vmatprep.subr.bf16.mxu0 %v567
    %816 = vmatpush1.bf16.msra.mxu0 %v566
    %817 = vmatprep.subr.bf16.mxu0 %v571
    %818 = vmatpush1.bf16.msra.mxu0 %v570
    %819 = vmatprep.subr.bf16.mxu0 %v575
    %820 = vmatpush1.bf16.msra.mxu0 %v574
    %821 = vmatprep.subr.bf16.mxu0 %v579
    %822 = vmatpush1.bf16.msra.mxu0 %v578
    %823 = vmatprep.subr.bf16.mxu0 %v583
    %824 = vmatpush1.bf16.msra.mxu0 %v582
    %825 = vmatprep.subr.bf16.mxu0 %v587
    %826 = vmatpush1.bf16.msra.mxu0 %v586
    %827 = vmatprep.subr.bf16.mxu0 %v591
    %828 = vmatpush1.bf16.msra.mxu0 %v590
    %829 = vmatprep.subr.bf16.mxu0 %v595
    %830 = vmatpush1.bf16.msra.mxu0 %v594
    %831 = vmatprep.subr.bf16.mxu0 0
    %832 = vmatpush1.bf16.msra.mxu0 0
    %833 = vmatprep.subr.bf16.mxu0 0
    %834 = vmatpush1.bf16.msra.mxu0 0
    %835 = vmatprep.subr.bf16.mxu0 0
    %836 = vmatpush1.bf16.msra.mxu0 0
    %837 = vmatprep.subr.bf16.mxu0 0
    %838 = vmatpush1.bf16.msra.mxu0 0
    %839 = vmatprep.subr.bf16.mxu0 0
    %840 = vmatpush1.bf16.msra.mxu0 0
    %841 = vmatprep.subr.bf16.mxu0 0
    %842 = vmatpush1.bf16.msra.mxu0 0
    %843 = vmatprep.subr.bf16.mxu0 0
    %844 = vmatpush1.bf16.msra.mxu0 0
    %845 = vmatprep.subr.bf16.mxu0 0
    %846 = vmatpush1.bf16.msra.mxu0 0
    %847 = vmatprep.mubr.bf16.mxu0 0
    %848 = vmatmul.mubr.bf16.gmra.mrb[0].mxu0 %v208
    %v849 = vpop.f32.mrb[0].mxu0
    %v850 = vadd.f32 %v809, %v849
    %v851 = vpop.f32.mrb[0].mxu0
    %v852 = vadd.f32 %v811, %v851
    %v853 = vpop.f32.mrb[0].mxu0
    %v854 = vpop.f32.mrb[0].mxu0
    %855 = vdwg.mxu0
    %vm856 = vcmp.gt.f32.partialorder %v768, 0.0
    %vm857 = vcmp.gt.f32.partialorder %v770, 0.0
    %vm858 = vcmp.gt.f32.partialorder %v850, 0.0
    %vm859 = vcmp.gt.f32.partialorder %v852, 0.0
    %v860 = vmul.f32 %v768, 0.01
    %v861 = vmul.f32 %v770, 0.01
    %v862 = vmul.f32 %v850, 0.01
    %v863 = vmul.f32 %v852, 0.01
    %v864 = vsel %vm856, %v768, %v860
    %v865 = vsel %vm857, %v770, %v861
    %v866 = vsel %vm858, %v850, %v862
    %v867 = vsel %vm859, %v852, %v863
    %v868 = vpack.c.bf16 %v864, %v864
    %v869 = vpack.c.bf16 %v865, %v865
    %v870 = vpack.c.bf16 %v866, %v866
    %v871 = vpack.c.bf16 %v867, %v867
    %v872 = vld [vmem:[#allocation7] sm:$0xff]
    %v873 = vld [vmem:[#allocation7 + $0x8] sm:$0xff]
    %v874 = vld [vmem:[#allocation7 + $0x10] sm:$0xff]
    %v875 = vld [vmem:[#allocation7 + $0x18] sm:$0xff]
    %v876 = vld [vmem:[#allocation7 + $0x20] sm:$0xff]
    %v877 = vld [vmem:[#allocation7 + $0x28] sm:$0xff]
    %v878 = vld [vmem:[#allocation7 + $0x30] sm:$0xff]
    %v879 = vld [vmem:[#allocation7 + $0x38] sm:$0xff]
    %v880 = vld [vmem:[#allocation7 + $0x40] sm:$0xff]
    %v881 = vld [vmem:[#allocation7 + $0x48] sm:$0xff]
    %v882 = vld [vmem:[#allocation7 + $0x50] sm:$0xff]
    %v883 = vld [vmem:[#allocation7 + $0x58] sm:$0xff]
    %v884 = vld [vmem:[#allocation7 + $0x60] sm:$0xff]
    %v885 = vld [vmem:[#allocation7 + $0x68] sm:$0xff]
    %v886 = vld [vmem:[#allocation7 + $0x70] sm:$0xff]
    %v887 = vld [vmem:[#allocation7 + $0x78] sm:$0xff]
    %v888 = vld [vmem:[#allocation7 + $0x80] sm:$0xff]
    %v889 = vld [vmem:[#allocation7 + $0x88] sm:$0xff]
    %v890 = vld [vmem:[#allocation7 + $0x90] sm:$0xff]
    %v891 = vld [vmem:[#allocation7 + $0x98] sm:$0xff]
    %v892 = vld [vmem:[#allocation7 + $0xa0] sm:$0xff]
    %v893 = vld [vmem:[#allocation7 + $0xa8] sm:$0xff]
    %v894 = vld [vmem:[#allocation7 + $0xb0] sm:$0xff]
    %v895 = vld [vmem:[#allocation7 + $0xb8] sm:$0xff]
    %v896 = vld [vmem:[#allocation7 + $0xc0] sm:$0xff]
    %v897 = vld [vmem:[#allocation7 + $0xc8] sm:$0xff]
    %v898 = vld [vmem:[#allocation7 + $0xd0] sm:$0xff]
    %v899 = vld [vmem:[#allocation7 + $0xd8] sm:$0xff]
    %v900 = vld [vmem:[#allocation7 + $0xe0] sm:$0xff]
    %v901 = vld [vmem:[#allocation7 + $0xe8] sm:$0xff]
    %v902 = vld [vmem:[#allocation7 + $0xf0] sm:$0xff]
    %v903 = vld [vmem:[#allocation7 + $0xf8] sm:$0xff]
    %v904 = vld [vmem:[#allocation7 + $0x100] sm:$0xff]
    %v905 = vld [vmem:[#allocation7 + $0x108] sm:$0xff]
    %v906 = vld [vmem:[#allocation7 + $0x110] sm:$0xff]
    %v907 = vld [vmem:[#allocation7 + $0x118] sm:$0xff]
    %v908 = vld [vmem:[#allocation7 + $0x120] sm:$0xff]
    %v909 = vld [vmem:[#allocation7 + $0x128] sm:$0xff]
    %v910 = vld [vmem:[#allocation7 + $0x130] sm:$0xff]
    %v911 = vld [vmem:[#allocation7 + $0x138] sm:$0xff]
    %v912 = vld [vmem:[#allocation7 + $0x140] sm:$0xff]
    %v913 = vld [vmem:[#allocation7 + $0x148] sm:$0xff]
    %v914 = vld [vmem:[#allocation7 + $0x150] sm:$0xff]
    %v915 = vld [vmem:[#allocation7 + $0x158] sm:$0xff]
    %v916 = vld [vmem:[#allocation7 + $0x160] sm:$0xff]
    %v917 = vld [vmem:[#allocation7 + $0x168] sm:$0xff]
    %v918 = vld [vmem:[#allocation7 + $0x170] sm:$0xff]
    %v919 = vld [vmem:[#allocation7 + $0x178] sm:$0xff]
    %v920 = vld [vmem:[#allocation7 + $0x180] sm:$0xff]
    %v921 = vld [vmem:[#allocation7 + $0x188] sm:$0xff]
    %v922 = vld [vmem:[#allocation7 + $0x190] sm:$0xff]
    %v923 = vld [vmem:[#allocation7 + $0x198] sm:$0xff]
    %v924 = vld [vmem:[#allocation7 + $0x1a0] sm:$0xff]
    %v925 = vld [vmem:[#allocation7 + $0x1a8] sm:$0xff]
    %v926 = vld [vmem:[#allocation7 + $0x1b0] sm:$0xff]
    %v927 = vld [vmem:[#allocation7 + $0x1b8] sm:$0xff]
    %v928 = vld [vmem:[#allocation7 + $0x1c0] sm:$0xff]
    %v929 = vld [vmem:[#allocation7 + $0x1c8] sm:$0xff]
    %v930 = vld [vmem:[#allocation7 + $0x1d0] sm:$0xff]
    %v931 = vld [vmem:[#allocation7 + $0x1d8] sm:$0xff]
    %v932 = vld [vmem:[#allocation7 + $0x1e0] sm:$0xff]
    %v933 = vld [vmem:[#allocation7 + $0x1e8] sm:$0xff]
    %v934 = vld [vmem:[#allocation7 + $0x1f0] sm:$0xff]
    %v935 = vld [vmem:[#allocation7 + $0x1f8] sm:$0xff]
    %v936 = vld [vmem:[#allocation7 + $0x200] sm:$0xff]
    %v937 = vld [vmem:[#allocation7 + $0x208] sm:$0xff]
    %v938 = vld [vmem:[#allocation7 + $0x210] sm:$0xff]
    %v939 = vld [vmem:[#allocation7 + $0x218] sm:$0xff]
    %v940 = vld [vmem:[#allocation7 + $0x220] sm:$0xff]
    %v941 = vld [vmem:[#allocation7 + $0x228] sm:$0xff]
    %v942 = vld [vmem:[#allocation7 + $0x230] sm:$0xff]
    %v943 = vld [vmem:[#allocation7 + $0x238] sm:$0xff]
    %v944 = vld [vmem:[#allocation7 + $0x240] sm:$0xff]
    %v945 = vld [vmem:[#allocation7 + $0x248] sm:$0xff]
    %v946 = vld [vmem:[#allocation7 + $0x250] sm:$0xff]
    %v947 = vld [vmem:[#allocation7 + $0x258] sm:$0xff]
    %v948 = vld [vmem:[#allocation7 + $0x260] sm:$0xff]
    %v949 = vld [vmem:[#allocation7 + $0x268] sm:$0xff]
    %v950 = vld [vmem:[#allocation7 + $0x270] sm:$0xff]
    %v951 = vld [vmem:[#allocation7 + $0x278] sm:$0xff]
    %v952 = vld [vmem:[#allocation7 + $0x280] sm:$0xff]
    %v953 = vld [vmem:[#allocation7 + $0x288] sm:$0xff]
    %v954 = vld [vmem:[#allocation7 + $0x290] sm:$0xff]
    %v955 = vld [vmem:[#allocation7 + $0x298] sm:$0xff]
    %v956 = vld [vmem:[#allocation7 + $0x2a0] sm:$0xff]
    %v957 = vld [vmem:[#allocation7 + $0x2a8] sm:$0xff]
    %v958 = vld [vmem:[#allocation7 + $0x2b0] sm:$0xff]
    %v959 = vld [vmem:[#allocation7 + $0x2b8] sm:$0xff]
    %v960 = vld [vmem:[#allocation7 + $0x2c0] sm:$0xff]
    %v961 = vld [vmem:[#allocation7 + $0x2c8] sm:$0xff]
    %v962 = vld [vmem:[#allocation7 + $0x2d0] sm:$0xff]
    %v963 = vld [vmem:[#allocation7 + $0x2d8] sm:$0xff]
    %v964 = vld [vmem:[#allocation7 + $0x2e0] sm:$0xff]
    %v965 = vld [vmem:[#allocation7 + $0x2e8] sm:$0xff]
    %v966 = vld [vmem:[#allocation7 + $0x2f0] sm:$0xff]
    %v967 = vld [vmem:[#allocation7 + $0x2f8] sm:$0xff]
    %v968 = vld [vmem:[#allocation7 + $0x300] sm:$0xff]
    %v969 = vld [vmem:[#allocation7 + $0x308] sm:$0xff]
    %v970 = vld [vmem:[#allocation7 + $0x310] sm:$0xff]
    %v971 = vld [vmem:[#allocation7 + $0x318] sm:$0xff]
    %v972 = vld [vmem:[#allocation7 + $0x320] sm:$0xff]
    %v973 = vld [vmem:[#allocation7 + $0x328] sm:$0xff]
    %v974 = vld [vmem:[#allocation7 + $0x330] sm:$0xff]
    %v975 = vld [vmem:[#allocation7 + $0x338] sm:$0xff]
    %v976 = vld [vmem:[#allocation7 + $0x340] sm:$0xff]
    %v977 = vld [vmem:[#allocation7 + $0x348] sm:$0xff]
    %v978 = vld [vmem:[#allocation7 + $0x350] sm:$0xff]
    %v979 = vld [vmem:[#allocation7 + $0x358] sm:$0xff]
    %v980 = vld [vmem:[#allocation7 + $0x360] sm:$0xff]
    %v981 = vld [vmem:[#allocation7 + $0x368] sm:$0xff]
    %v982 = vld [vmem:[#allocation7 + $0x370] sm:$0xff]
    %v983 = vld [vmem:[#allocation7 + $0x378] sm:$0xff]
    %v984 = vld [vmem:[#allocation7 + $0x380] sm:$0xff]
    %v985 = vld [vmem:[#allocation7 + $0x388] sm:$0xff]
    %v986 = vld [vmem:[#allocation7 + $0x390] sm:$0xff]
    %v987 = vld [vmem:[#allocation7 + $0x398] sm:$0xff]
    %v988 = vld [vmem:[#allocation7 + $0x3a0] sm:$0xff]
    %v989 = vld [vmem:[#allocation7 + $0x3a8] sm:$0xff]
    %v990 = vld [vmem:[#allocation7 + $0x3b0] sm:$0xff]
    %v991 = vld [vmem:[#allocation7 + $0x3b8] sm:$0xff]
    %v992 = vld [vmem:[#allocation7 + $0x3c0] sm:$0xff]
    %v993 = vld [vmem:[#allocation7 + $0x3c8] sm:$0xff]
    %v994 = vld [vmem:[#allocation7 + $0x3d0] sm:$0xff]
    %v995 = vld [vmem:[#allocation7 + $0x3d8] sm:$0xff]
    %v996 = vld [vmem:[#allocation7 + $0x3e0] sm:$0xff]
    %v997 = vld [vmem:[#allocation7 + $0x3e8] sm:$0xff]
    %v998 = vld [vmem:[#allocation7 + $0x3f0] sm:$0xff]
    %v999 = vld [vmem:[#allocation7 + $0x3f8] sm:$0xff]
    %v1000 = vld [vmem:[%s4] sm:$0xf]
    %v1002 = vlaneseq
    %v1003 = vshrl.u32 %v1002, 7
    %v1004 = vsub.s32 0, %v1003
    %v1005 = vrot.slane %v1000, %v1004
    %v1006 = vlaneseq
    %v1007 = vshrl.u32 %v1006, 7
    %v1008 = vsub.s32 1, %v1007
    %v1009 = vrot.slane %v1000, %v1008
    %v1010 = vlaneseq
    %v1011 = vshrl.u32 %v1010, 7
    %v1012 = vsub.s32 2, %v1011
    %v1013 = vrot.slane %v1000, %v1012
    %v1014 = vlaneseq
    %v1015 = vshrl.u32 %v1014, 7
    %v1016 = vsub.s32 3, %v1015
    %v1017 = vrot.slane %v1000, %v1016
    %v1150 = vunpack.c.l.b16 %v872
    %v1151 = vunpack.c.h.b16 %v872
    %v1152 = vunpack.c.l.b16 %v873
    %v1153 = vunpack.c.h.b16 %v873
    %v1154 = vunpack.c.l.b16 %v874
    %v1155 = vunpack.c.h.b16 %v874
    %v1156 = vunpack.c.l.b16 %v875
    %v1157 = vunpack.c.h.b16 %v875
    %v1158 = vunpack.c.l.b16 %v876
    %v1159 = vunpack.c.h.b16 %v876
    %v1160 = vunpack.c.l.b16 %v877
    %v1161 = vunpack.c.h.b16 %v877
    %v1162 = vunpack.c.l.b16 %v878
    %v1163 = vunpack.c.h.b16 %v878
    %v1164 = vunpack.c.l.b16 %v879
    %v1165 = vunpack.c.h.b16 %v879
    %v1166 = vunpack.c.l.b16 %v880
    %v1167 = vunpack.c.h.b16 %v880
    %v1168 = vunpack.c.l.b16 %v881
    %v1169 = vunpack.c.h.b16 %v881
    %v1170 = vunpack.c.l.b16 %v882
    %v1171 = vunpack.c.h.b16 %v882
    %v1172 = vunpack.c.l.b16 %v883
    %v1173 = vunpack.c.h.b16 %v883
    %v1174 = vunpack.c.l.b16 %v884
    %v1175 = vunpack.c.h.b16 %v884
    %v1176 = vunpack.c.l.b16 %v885
    %v1177 = vunpack.c.h.b16 %v885
    %v1178 = vunpack.c.l.b16 %v886
    %v1179 = vunpack.c.h.b16 %v886
    %v1180 = vunpack.c.l.b16 %v887
    %v1181 = vunpack.c.h.b16 %v887
    %v1182 = vunpack.c.l.b16 %v888
    %v1183 = vunpack.c.h.b16 %v888
    %v1184 = vunpack.c.l.b16 %v889
    %v1185 = vunpack.c.h.b16 %v889
    %v1186 = vunpack.c.l.b16 %v890
    %v1187 = vunpack.c.h.b16 %v890
    %v1188 = vunpack.c.l.b16 %v891
    %v1189 = vunpack.c.h.b16 %v891
    %v1190 = vunpack.c.l.b16 %v892
    %v1191 = vunpack.c.h.b16 %v892
    %v1192 = vunpack.c.l.b16 %v893
    %v1193 = vunpack.c.h.b16 %v893
    %v1194 = vunpack.c.l.b16 %v894
    %v1195 = vunpack.c.h.b16 %v894
    %v1196 = vunpack.c.l.b16 %v895
    %v1197 = vunpack.c.h.b16 %v895
    %v1198 = vunpack.c.l.b16 %v896
    %v1199 = vunpack.c.h.b16 %v896
    %v1200 = vunpack.c.l.b16 %v897
    %v1201 = vunpack.c.h.b16 %v897
    %v1202 = vunpack.c.l.b16 %v898
    %v1203 = vunpack.c.h.b16 %v898
    %v1204 = vunpack.c.l.b16 %v899
    %v1205 = vunpack.c.h.b16 %v899
    %v1206 = vunpack.c.l.b16 %v900
    %v1207 = vunpack.c.h.b16 %v900
    %v1208 = vunpack.c.l.b16 %v901
    %v1209 = vunpack.c.h.b16 %v901
    %v1210 = vunpack.c.l.b16 %v902
    %v1211 = vunpack.c.h.b16 %v902
    %v1212 = vunpack.c.l.b16 %v903
    %v1213 = vunpack.c.h.b16 %v903
    %v1214 = vunpack.c.l.b16 %v904
    %v1215 = vunpack.c.h.b16 %v904
    %v1216 = vunpack.c.l.b16 %v905
    %v1217 = vunpack.c.h.b16 %v905
    %v1218 = vunpack.c.l.b16 %v906
    %v1219 = vunpack.c.h.b16 %v906
    %v1220 = vunpack.c.l.b16 %v907
    %v1221 = vunpack.c.h.b16 %v907
    %v1222 = vunpack.c.l.b16 %v908
    %v1223 = vunpack.c.h.b16 %v908
    %v1224 = vunpack.c.l.b16 %v909
    %v1225 = vunpack.c.h.b16 %v909
    %v1226 = vunpack.c.l.b16 %v910
    %v1227 = vunpack.c.h.b16 %v910
    %v1228 = vunpack.c.l.b16 %v911
    %v1229 = vunpack.c.h.b16 %v911
    %v1230 = vunpack.c.l.b16 %v912
    %v1231 = vunpack.c.h.b16 %v912
    %v1232 = vunpack.c.l.b16 %v913
    %v1233 = vunpack.c.h.b16 %v913
    %v1234 = vunpack.c.l.b16 %v914
    %v1235 = vunpack.c.h.b16 %v914
    %v1236 = vunpack.c.l.b16 %v915
    %v1237 = vunpack.c.h.b16 %v915
    %v1238 = vunpack.c.l.b16 %v916
    %v1239 = vunpack.c.h.b16 %v916
    %v1240 = vunpack.c.l.b16 %v917
    %v1241 = vunpack.c.h.b16 %v917
    %v1242 = vunpack.c.l.b16 %v918
    %v1243 = vunpack.c.h.b16 %v918
    %v1244 = vunpack.c.l.b16 %v919
    %v1245 = vunpack.c.h.b16 %v919
    %v1246 = vunpack.c.l.b16 %v920
    %v1247 = vunpack.c.h.b16 %v920
    %v1248 = vunpack.c.l.b16 %v921
    %v1249 = vunpack.c.h.b16 %v921
    %v1250 = vunpack.c.l.b16 %v922
    %v1251 = vunpack.c.h.b16 %v922
    %v1252 = vunpack.c.l.b16 %v923
    %v1253 = vunpack.c.h.b16 %v923
    %v1254 = vunpack.c.l.b16 %v924
    %v1255 = vunpack.c.h.b16 %v924
    %v1256 = vunpack.c.l.b16 %v925
    %v1257 = vunpack.c.h.b16 %v925
    %v1258 = vunpack.c.l.b16 %v926
    %v1259 = vunpack.c.h.b16 %v926
    %v1260 = vunpack.c.l.b16 %v927
    %v1261 = vunpack.c.h.b16 %v927
    %v1262 = vunpack.c.l.b16 %v928
    %v1263 = vunpack.c.h.b16 %v928
    %v1264 = vunpack.c.l.b16 %v929
    %v1265 = vunpack.c.h.b16 %v929
    %v1266 = vunpack.c.l.b16 %v930
    %v1267 = vunpack.c.h.b16 %v930
    %v1268 = vunpack.c.l.b16 %v931
    %v1269 = vunpack.c.h.b16 %v931
    %v1270 = vunpack.c.l.b16 %v932
    %v1271 = vunpack.c.h.b16 %v932
    %v1272 = vunpack.c.l.b16 %v933
    %v1273 = vunpack.c.h.b16 %v933
    %v1274 = vunpack.c.l.b16 %v934
    %v1275 = vunpack.c.h.b16 %v934
    %v1276 = vunpack.c.l.b16 %v935
    %v1277 = vunpack.c.h.b16 %v935
    %v1278 = vunpack.c.l.b16 %v936
    %v1279 = vunpack.c.h.b16 %v936
    %v1280 = vunpack.c.l.b16 %v937
    %v1281 = vunpack.c.h.b16 %v937
    %v1282 = vunpack.c.l.b16 %v938
    %v1283 = vunpack.c.h.b16 %v938
    %v1284 = vunpack.c.l.b16 %v939
    %v1285 = vunpack.c.h.b16 %v939
    %v1286 = vunpack.c.l.b16 %v940
    %v1287 = vunpack.c.h.b16 %v940
    %v1288 = vunpack.c.l.b16 %v941
    %v1289 = vunpack.c.h.b16 %v941
    %v1290 = vunpack.c.l.b16 %v942
    %v1291 = vunpack.c.h.b16 %v942
    %v1292 = vunpack.c.l.b16 %v943
    %v1293 = vunpack.c.h.b16 %v943
    %v1294 = vunpack.c.l.b16 %v944
    %v1295 = vunpack.c.h.b16 %v944
    %v1296 = vunpack.c.l.b16 %v945
    %v1297 = vunpack.c.h.b16 %v945
    %v1298 = vunpack.c.l.b16 %v946
    %v1299 = vunpack.c.h.b16 %v946
    %v1300 = vunpack.c.l.b16 %v947
    %v1301 = vunpack.c.h.b16 %v947
    %v1302 = vunpack.c.l.b16 %v948
    %v1303 = vunpack.c.h.b16 %v948
    %v1304 = vunpack.c.l.b16 %v949
    %v1305 = vunpack.c.h.b16 %v949
    %v1306 = vunpack.c.l.b16 %v950
    %v1307 = vunpack.c.h.b16 %v950
    %v1308 = vunpack.c.l.b16 %v951
    %v1309 = vunpack.c.h.b16 %v951
    %v1310 = vunpack.c.l.b16 %v952
    %v1311 = vunpack.c.h.b16 %v952
    %v1312 = vunpack.c.l.b16 %v953
    %v1313 = vunpack.c.h.b16 %v953
    %v1314 = vunpack.c.l.b16 %v954
    %v1315 = vunpack.c.h.b16 %v954
    %v1316 = vunpack.c.l.b16 %v955
    %v1317 = vunpack.c.h.b16 %v955
    %v1318 = vunpack.c.l.b16 %v956
    %v1319 = vunpack.c.h.b16 %v956
    %v1320 = vunpack.c.l.b16 %v957
    %v1321 = vunpack.c.h.b16 %v957
    %v1322 = vunpack.c.l.b16 %v958
    %v1323 = vunpack.c.h.b16 %v958
    %v1324 = vunpack.c.l.b16 %v959
    %v1325 = vunpack.c.h.b16 %v959
    %v1326 = vunpack.c.l.b16 %v960
    %v1327 = vunpack.c.h.b16 %v960
    %v1328 = vunpack.c.l.b16 %v961
    %v1329 = vunpack.c.h.b16 %v961
    %v1330 = vunpack.c.l.b16 %v962
    %v1331 = vunpack.c.h.b16 %v962
    %v1332 = vunpack.c.l.b16 %v963
    %v1333 = vunpack.c.h.b16 %v963
    %v1334 = vunpack.c.l.b16 %v964
    %v1335 = vunpack.c.h.b16 %v964
    %v1336 = vunpack.c.l.b16 %v965
    %v1337 = vunpack.c.h.b16 %v965
    %v1338 = vunpack.c.l.b16 %v966
    %v1339 = vunpack.c.h.b16 %v966
    %v1340 = vunpack.c.l.b16 %v967
    %v1341 = vunpack.c.h.b16 %v967
    %v1342 = vunpack.c.l.b16 %v968
    %v1343 = vunpack.c.h.b16 %v968
    %v1344 = vunpack.c.l.b16 %v969
    %v1345 = vunpack.c.h.b16 %v969
    %v1346 = vunpack.c.l.b16 %v970
    %v1347 = vunpack.c.h.b16 %v970
    %v1348 = vunpack.c.l.b16 %v971
    %v1349 = vunpack.c.h.b16 %v971
    %v1350 = vunpack.c.l.b16 %v972
    %v1351 = vunpack.c.h.b16 %v972
    %v1352 = vunpack.c.l.b16 %v973
    %v1353 = vunpack.c.h.b16 %v973
    %v1354 = vunpack.c.l.b16 %v974
    %v1355 = vunpack.c.h.b16 %v974
    %v1356 = vunpack.c.l.b16 %v975
    %v1357 = vunpack.c.h.b16 %v975
    %v1358 = vunpack.c.l.b16 %v976
    %v1359 = vunpack.c.h.b16 %v976
    %v1360 = vunpack.c.l.b16 %v977
    %v1361 = vunpack.c.h.b16 %v977
    %v1362 = vunpack.c.l.b16 %v978
    %v1363 = vunpack.c.h.b16 %v978
    %v1364 = vunpack.c.l.b16 %v979
    %v1365 = vunpack.c.h.b16 %v979
    %v1366 = vunpack.c.l.b16 %v980
    %v1367 = vunpack.c.h.b16 %v980
    %v1368 = vunpack.c.l.b16 %v981
    %v1369 = vunpack.c.h.b16 %v981
    %v1370 = vunpack.c.l.b16 %v982
    %v1371 = vunpack.c.h.b16 %v982
    %v1372 = vunpack.c.l.b16 %v983
    %v1373 = vunpack.c.h.b16 %v983
    %v1374 = vunpack.c.l.b16 %v984
    %v1375 = vunpack.c.h.b16 %v984
    %v1376 = vunpack.c.l.b16 %v985
    %v1377 = vunpack.c.h.b16 %v985
    %v1378 = vunpack.c.l.b16 %v986
    %v1379 = vunpack.c.h.b16 %v986
    %v1380 = vunpack.c.l.b16 %v987
    %v1381 = vunpack.c.h.b16 %v987
    %v1382 = vunpack.c.l.b16 %v988
    %v1383 = vunpack.c.h.b16 %v988
    %v1384 = vunpack.c.l.b16 %v989
    %v1385 = vunpack.c.h.b16 %v989
    %v1386 = vunpack.c.l.b16 %v990
    %v1387 = vunpack.c.h.b16 %v990
    %v1388 = vunpack.c.l.b16 %v991
    %v1389 = vunpack.c.h.b16 %v991
    %v1390 = vunpack.c.l.b16 %v992
    %v1391 = vunpack.c.h.b16 %v992
    %v1392 = vunpack.c.l.b16 %v993
    %v1393 = vunpack.c.h.b16 %v993
    %v1394 = vunpack.c.l.b16 %v994
    %v1395 = vunpack.c.h.b16 %v994
    %v1396 = vunpack.c.l.b16 %v995
    %v1397 = vunpack.c.h.b16 %v995
    %v1398 = vunpack.c.l.b16 %v996
    %v1399 = vunpack.c.h.b16 %v996
    %v1400 = vunpack.c.l.b16 %v997
    %v1401 = vunpack.c.h.b16 %v997
    %v1402 = vunpack.c.l.b16 %v998
    %v1403 = vunpack.c.h.b16 %v998
    %v1404 = vunpack.c.l.b16 %v999
    %v1405 = vunpack.c.h.b16 %v999
    %v1406 = vpack.c.b16 %v1154, %v1150
    %v1407 = vpack.c.b16 %v1155, %v1151
    %v1408 = vpack.c.b16 %v1156, %v1152
    %v1409 = vpack.c.b16 %v1157, %v1153
    %v1410 = vpack.c.b16 %v1162, %v1158
    %v1411 = vpack.c.b16 %v1163, %v1159
    %v1412 = vpack.c.b16 %v1164, %v1160
    %v1413 = vpack.c.b16 %v1165, %v1161
    %v1414 = vpack.c.b16 %v1170, %v1166
    %v1415 = vpack.c.b16 %v1171, %v1167
    %v1416 = vpack.c.b16 %v1172, %v1168
    %v1417 = vpack.c.b16 %v1173, %v1169
    %v1418 = vpack.c.b16 %v1178, %v1174
    %v1419 = vpack.c.b16 %v1179, %v1175
    %v1420 = vpack.c.b16 %v1180, %v1176
    %v1421 = vpack.c.b16 %v1181, %v1177
    %v1422 = vpack.c.b16 %v1186, %v1182
    %v1423 = vpack.c.b16 %v1187, %v1183
    %v1424 = vpack.c.b16 %v1188, %v1184
    %v1425 = vpack.c.b16 %v1189, %v1185
    %v1426 = vpack.c.b16 %v1194, %v1190
    %v1427 = vpack.c.b16 %v1195, %v1191
    %v1428 = vpack.c.b16 %v1196, %v1192
    %v1429 = vpack.c.b16 %v1197, %v1193
    %v1430 = vpack.c.b16 %v1202, %v1198
    %v1431 = vpack.c.b16 %v1203, %v1199
    %v1432 = vpack.c.b16 %v1204, %v1200
    %v1433 = vpack.c.b16 %v1205, %v1201
    %v1434 = vpack.c.b16 %v1210, %v1206
    %v1435 = vpack.c.b16 %v1211, %v1207
    %v1436 = vpack.c.b16 %v1212, %v1208
    %v1437 = vpack.c.b16 %v1213, %v1209
    %v1438 = vpack.c.b16 %v1218, %v1214
    %v1439 = vpack.c.b16 %v1219, %v1215
    %v1440 = vpack.c.b16 %v1220, %v1216
    %v1441 = vpack.c.b16 %v1221, %v1217
    %v1442 = vpack.c.b16 %v1226, %v1222
    %v1443 = vpack.c.b16 %v1227, %v1223
    %v1444 = vpack.c.b16 %v1228, %v1224
    %v1445 = vpack.c.b16 %v1229, %v1225
    %v1446 = vpack.c.b16 %v1234, %v1230
    %v1447 = vpack.c.b16 %v1235, %v1231
    %v1448 = vpack.c.b16 %v1236, %v1232
    %v1449 = vpack.c.b16 %v1237, %v1233
    %v1450 = vpack.c.b16 %v1242, %v1238
    %v1451 = vpack.c.b16 %v1243, %v1239
    %v1452 = vpack.c.b16 %v1244, %v1240
    %v1453 = vpack.c.b16 %v1245, %v1241
    %v1454 = vpack.c.b16 %v1250, %v1246
    %v1455 = vpack.c.b16 %v1251, %v1247
    %v1456 = vpack.c.b16 %v1252, %v1248
    %v1457 = vpack.c.b16 %v1253, %v1249
    %v1458 = vpack.c.b16 %v1258, %v1254
    %v1459 = vpack.c.b16 %v1259, %v1255
    %v1460 = vpack.c.b16 %v1260, %v1256
    %v1461 = vpack.c.b16 %v1261, %v1257
    %v1462 = vpack.c.b16 %v1266, %v1262
    %v1463 = vpack.c.b16 %v1267, %v1263
    %v1464 = vpack.c.b16 %v1268, %v1264
    %v1465 = vpack.c.b16 %v1269, %v1265
    %v1466 = vpack.c.b16 %v1274, %v1270
    %v1467 = vpack.c.b16 %v1275, %v1271
    %v1468 = vpack.c.b16 %v1276, %v1272
    %v1469 = vpack.c.b16 %v1277, %v1273
    %v1470 = vpack.c.b16 %v1282, %v1278
    %v1471 = vpack.c.b16 %v1283, %v1279
    %v1472 = vpack.c.b16 %v1284, %v1280
    %v1473 = vpack.c.b16 %v1285, %v1281
    %v1474 = vpack.c.b16 %v1290, %v1286
    %v1475 = vpack.c.b16 %v1291, %v1287
    %v1476 = vpack.c.b16 %v1292, %v1288
    %v1477 = vpack.c.b16 %v1293, %v1289
    %v1478 = vpack.c.b16 %v1298, %v1294
    %v1479 = vpack.c.b16 %v1299, %v1295
    %v1480 = vpack.c.b16 %v1300, %v1296
    %v1481 = vpack.c.b16 %v1301, %v1297
    %v1482 = vpack.c.b16 %v1306, %v1302
    %v1483 = vpack.c.b16 %v1307, %v1303
    %v1484 = vpack.c.b16 %v1308, %v1304
    %v1485 = vpack.c.b16 %v1309, %v1305
    %v1486 = vpack.c.b16 %v1314, %v1310
    %v1487 = vpack.c.b16 %v1315, %v1311
    %v1488 = vpack.c.b16 %v1316, %v1312
    %v1489 = vpack.c.b16 %v1317, %v1313
    %v1490 = vpack.c.b16 %v1322, %v1318
    %v1491 = vpack.c.b16 %v1323, %v1319
    %v1492 = vpack.c.b16 %v1324, %v1320
    %v1493 = vpack.c.b16 %v1325, %v1321
    %v1494 = vpack.c.b16 %v1330, %v1326
    %v1495 = vpack.c.b16 %v1331, %v1327
    %v1496 = vpack.c.b16 %v1332, %v1328
    %v1497 = vpack.c.b16 %v1333, %v1329
    %v1498 = vpack.c.b16 %v1338, %v1334
    %v1499 = vpack.c.b16 %v1339, %v1335
    %v1500 = vpack.c.b16 %v1340, %v1336
    %v1501 = vpack.c.b16 %v1341, %v1337
    %v1502 = vpack.c.b16 %v1346, %v1342
    %v1503 = vpack.c.b16 %v1347, %v1343
    %v1504 = vpack.c.b16 %v1348, %v1344
    %v1505 = vpack.c.b16 %v1349, %v1345
    %v1506 = vpack.c.b16 %v1354, %v1350
    %v1507 = vpack.c.b16 %v1355, %v1351
    %v1508 = vpack.c.b16 %v1356, %v1352
    %v1509 = vpack.c.b16 %v1357, %v1353
    %v1510 = vpack.c.b16 %v1362, %v1358
    %v1511 = vpack.c.b16 %v1363, %v1359
    %v1512 = vpack.c.b16 %v1364, %v1360
    %v1513 = vpack.c.b16 %v1365, %v1361
    %v1514 = vpack.c.b16 %v1370, %v1366
    %v1515 = vpack.c.b16 %v1371, %v1367
    %v1516 = vpack.c.b16 %v1372, %v1368
    %v1517 = vpack.c.b16 %v1373, %v1369
    %v1518 = vpack.c.b16 %v1378, %v1374
    %v1519 = vpack.c.b16 %v1379, %v1375
    %v1520 = vpack.c.b16 %v1380, %v1376
    %v1521 = vpack.c.b16 %v1381, %v1377
    %v1522 = vpack.c.b16 %v1386, %v1382
    %v1523 = vpack.c.b16 %v1387, %v1383
    %v1524 = vpack.c.b16 %v1388, %v1384
    %v1525 = vpack.c.b16 %v1389, %v1385
    %v1526 = vpack.c.b16 %v1394, %v1390
    %v1527 = vpack.c.b16 %v1395, %v1391
    %v1528 = vpack.c.b16 %v1396, %v1392
    %v1529 = vpack.c.b16 %v1397, %v1393
    %v1530 = vpack.c.b16 %v1402, %v1398
    %v1531 = vpack.c.b16 %v1403, %v1399
    %v1532 = vpack.c.b16 %v1404, %v1400
    %v1533 = vpack.c.b16 %v1405, %v1401
    %1662 = vmatprep.subr.bf16.mxu0 %v1407
    %1663 = vmatpush1.bf16.msra.mxu0 %v1406
    %1664 = vmatprep.subr.bf16.mxu0 %v1411
    %1665 = vmatpush1.bf16.msra.mxu0 %v1410
    %1666 = vmatprep.subr.bf16.mxu0 %v1415
    %1667 = vmatpush1.bf16.msra.mxu0 %v1414
    %1668 = vmatprep.subr.bf16.mxu0 %v1419
    %1669 = vmatpush1.bf16.msra.mxu0 %v1418
    %1670 = vmatprep.subr.bf16.mxu0 %v1423
    %1671 = vmatpush1.bf16.msra.mxu0 %v1422
    %1672 = vmatprep.subr.bf16.mxu0 %v1427
    %1673 = vmatpush1.bf16.msra.mxu0 %v1426
    %1674 = vmatprep.subr.bf16.mxu0 %v1431
    %1675 = vmatpush1.bf16.msra.mxu0 %v1430
    %1676 = vmatprep.subr.bf16.mxu0 %v1435
    %1677 = vmatpush1.bf16.msra.mxu0 %v1434
    %1678 = vmatprep.subr.bf16.mxu0 %v1439
    %1679 = vmatpush1.bf16.msra.mxu0 %v1438
    %1680 = vmatprep.subr.bf16.mxu0 %v1443
    %1681 = vmatpush1.bf16.msra.mxu0 %v1442
    %1682 = vmatprep.subr.bf16.mxu0 %v1447
    %1683 = vmatpush1.bf16.msra.mxu0 %v1446
    %1684 = vmatprep.subr.bf16.mxu0 %v1451
    %1685 = vmatpush1.bf16.msra.mxu0 %v1450
    %1686 = vmatprep.subr.bf16.mxu0 %v1455
    %1687 = vmatpush1.bf16.msra.mxu0 %v1454
    %1688 = vmatprep.subr.bf16.mxu0 %v1459
    %1689 = vmatpush1.bf16.msra.mxu0 %v1458
    %1690 = vmatprep.subr.bf16.mxu0 %v1463
    %1691 = vmatpush1.bf16.msra.mxu0 %v1462
    %1692 = vmatprep.subr.bf16.mxu0 %v1467
    %1693 = vmatpush1.bf16.msra.mxu0 %v1466
    %1694 = vmatprep.mubr.bf16.mxu0 %v869
    %1695 = vmatmul.mubr.bf16.gmra.mrb[0].mxu0 %v868
    %v1696 = vpop.f32.mrb[0].mxu0
    %v1697 = vadd.f32 %v1005, %v1696
    %v1698 = vpop.f32.mrb[0].mxu0
    %v1699 = vadd.f32 %v1009, %v1698
    %v1700 = vpop.f32.mrb[0].mxu0
    %v1701 = vpop.f32.mrb[0].mxu0
    %1702 = vdwg.mxu0
    %1703 = vmatprep.subr.bf16.mxu0 %v1471
    %1704 = vmatpush1.bf16.msra.mxu0 %v1470
    %1705 = vmatprep.subr.bf16.mxu0 %v1475
    %1706 = vmatpush1.bf16.msra.mxu0 %v1474
    %1707 = vmatprep.subr.bf16.mxu0 %v1479
    %1708 = vmatpush1.bf16.msra.mxu0 %v1478
    %1709 = vmatprep.subr.bf16.mxu0 %v1483
    %1710 = vmatpush1.bf16.msra.mxu0 %v1482
    %1711 = vmatprep.subr.bf16.mxu0 %v1487
    %1712 = vmatpush1.bf16.msra.mxu0 %v1486
    %1713 = vmatprep.subr.bf16.mxu0 %v1491
    %1714 = vmatpush1.bf16.msra.mxu0 %v1490
    %1715 = vmatprep.subr.bf16.mxu0 %v1495
    %1716 = vmatpush1.bf16.msra.mxu0 %v1494
    %1717 = vmatprep.subr.bf16.mxu0 %v1499
    %1718 = vmatpush1.bf16.msra.mxu0 %v1498
    %1719 = vmatprep.subr.bf16.mxu0 %v1503
    %1720 = vmatpush1.bf16.msra.mxu0 %v1502
    %1721 = vmatprep.subr.bf16.mxu0 %v1507
    %1722 = vmatpush1.bf16.msra.mxu0 %v1506
    %1723 = vmatprep.subr.bf16.mxu0 %v1511
    %1724 = vmatpush1.bf16.msra.mxu0 %v1510
    %1725 = vmatprep.subr.bf16.mxu0 %v1515
    %1726 = vmatpush1.bf16.msra.mxu0 %v1514
    %1727 = vmatprep.subr.bf16.mxu0 %v1519
    %1728 = vmatpush1.bf16.msra.mxu0 %v1518
    %1729 = vmatprep.subr.bf16.mxu0 %v1523
    %1730 = vmatpush1.bf16.msra.mxu0 %v1522
    %1731 = vmatprep.subr.bf16.mxu0 %v1527
    %1732 = vmatpush1.bf16.msra.mxu0 %v1526
    %1733 = vmatprep.subr.bf16.mxu0 %v1531
    %1734 = vmatpush1.bf16.msra.mxu0 %v1530
    %1735 = vmatprep.mubr.bf16.mxu0 %v871
    %1736 = vmatmul.mubr.bf16.gmra.mrb[0].mxu0 %v870
    %v1737 = vpop.f32.mrb[0].mxu0
    %v1738 = vadd.f32 %v1697, %v1737
    %v1739 = vpop.f32.mrb[0].mxu0
    %v1740 = vadd.f32 %v1699, %v1739
    %v1741 = vpop.f32.mrb[0].mxu0
    %v1742 = vpop.f32.mrb[0].mxu0
    %1743 = vdwg.mxu0
    %1744 = vmatprep.subr.bf16.mxu0 %v1409
    %1745 = vmatpush1.bf16.msra.mxu0 %v1408
    %1746 = vmatprep.subr.bf16.mxu0 %v1413
    %1747 = vmatpush1.bf16.msra.mxu0 %v1412
    %1748 = vmatprep.subr.bf16.mxu0 %v1417
    %1749 = vmatpush1.bf16.msra.mxu0 %v1416
    %1750 = vmatprep.subr.bf16.mxu0 %v1421
    %1751 = vmatpush1.bf16.msra.mxu0 %v1420
    %1752 = vmatprep.subr.bf16.mxu0 %v1425
    %1753 = vmatpush1.bf16.msra.mxu0 %v1424
    %1754 = vmatprep.subr.bf16.mxu0 %v1429
    %1755 = vmatpush1.bf16.msra.mxu0 %v1428
    %1756 = vmatprep.subr.bf16.mxu0 %v1433
    %1757 = vmatpush1.bf16.msra.mxu0 %v1432
    %1758 = vmatprep.subr.bf16.mxu0 %v1437
    %1759 = vmatpush1.bf16.msra.mxu0 %v1436
    %1760 = vmatprep.subr.bf16.mxu0 %v1441
    %1761 = vmatpush1.bf16.msra.mxu0 %v1440
    %1762 = vmatprep.subr.bf16.mxu0 %v1445
    %1763 = vmatpush1.bf16.msra.mxu0 %v1444
    %1764 = vmatprep.subr.bf16.mxu0 %v1449
    %1765 = vmatpush1.bf16.msra.mxu0 %v1448
    %1766 = vmatprep.subr.bf16.mxu0 %v1453
    %1767 = vmatpush1.bf16.msra.mxu0 %v1452
    %1768 = vmatprep.subr.bf16.mxu0 %v1457
    %1769 = vmatpush1.bf16.msra.mxu0 %v1456
    %1770 = vmatprep.subr.bf16.mxu0 %v1461
    %1771 = vmatpush1.bf16.msra.mxu0 %v1460
    %1772 = vmatprep.subr.bf16.mxu0 %v1465
    %1773 = vmatpush1.bf16.msra.mxu0 %v1464
    %1774 = vmatprep.subr.bf16.mxu0 %v1469
    %1775 = vmatpush1.bf16.msra.mxu0 %v1468
    %1776 = vmatprep.mubr.bf16.mxu0 %v869
    %1777 = vmatmul.mubr.bf16.gmra.mrb[0].mxu0 %v868
    %v1778 = vpop.f32.mrb[0].mxu0
    %v1779 = vadd.f32 %v1013, %v1778
    %v1780 = vpop.f32.mrb[0].mxu0
    %v1781 = vadd.f32 %v1017, %v1780
    %v1782 = vpop.f32.mrb[0].mxu0
    %v1783 = vpop.f32.mrb[0].mxu0
    %1784 = vdwg.mxu0
    %1785 = vmatprep.subr.bf16.mxu0 %v1473
    %1786 = vmatpush1.bf16.msra.mxu0 %v1472
    %1787 = vmatprep.subr.bf16.mxu0 %v1477
    %1788 = vmatpush1.bf16.msra.mxu0 %v1476
    %1789 = vmatprep.subr.bf16.mxu0 %v1481
    %1790 = vmatpush1.bf16.msra.mxu0 %v1480
    %1791 = vmatprep.subr.bf16.mxu0 %v1485
    %1792 = vmatpush1.bf16.msra.mxu0 %v1484
    %1793 = vmatprep.subr.bf16.mxu0 %v1489
    %1794 = vmatpush1.bf16.msra.mxu0 %v1488
    %1795 = vmatprep.subr.bf16.mxu0 %v1493
    %1796 = vmatpush1.bf16.msra.mxu0 %v1492
    %1797 = vmatprep.subr.bf16.mxu0 %v1497
    %1798 = vmatpush1.bf16.msra.mxu0 %v1496
    %1799 = vmatprep.subr.bf16.mxu0 %v1501
    %1800 = vmatpush1.bf16.msra.mxu0 %v1500
    %1801 = vmatprep.subr.bf16.mxu0 %v1505
    %1802 = vmatpush1.bf16.msra.mxu0 %v1504
    %1803 = vmatprep.subr.bf16.mxu0 %v1509
    %1804 = vmatpush1.bf16.msra.mxu0 %v1508
    %1805 = vmatprep.subr.bf16.mxu0 %v1513
    %1806 = vmatpush1.bf16.msra.mxu0 %v1512
    %1807 = vmatprep.subr.bf16.mxu0 %v1517
    %1808 = vmatpush1.bf16.msra.mxu0 %v1516
    %1809 = vmatprep.subr.bf16.mxu0 %v1521
    %1810 = vmatpush1.bf16.msra.mxu0 %v1520
    %1811 = vmatprep.subr.bf16.mxu0 %v1525
    %1812 = vmatpush1.bf16.msra.mxu0 %v1524
    %1813 = vmatprep.subr.bf16.mxu0 %v1529
    %1814 = vmatpush1.bf16.msra.mxu0 %v1528
    %1815 = vmatprep.subr.bf16.mxu0 %v1533
    %1816 = vmatpush1.bf16.msra.mxu0 %v1532
    %1817 = vmatprep.mubr.bf16.mxu0 %v871
    %1818 = vmatmul.mubr.bf16.gmra.mrb[0].mxu0 %v870
    %v1819 = vpop.f32.mrb[0].mxu0
    %v1820 = vadd.f32 %v1779, %v1819
    %v1821 = vpop.f32.mrb[0].mxu0
    %v1822 = vadd.f32 %v1781, %v1821
    %v1823 = vpop.f32.mrb[0].mxu0
    %v1824 = vpop.f32.mrb[0].mxu0
    %1825 = vdwg.mxu0
    %vm1826 = vcmp.gt.f32.partialorder %v1738, 0.0
    %vm1827 = vcmp.gt.f32.partialorder %v1740, 0.0
    %vm1828 = vcmp.gt.f32.partialorder %v1820, 0.0
    %vm1829 = vcmp.gt.f32.partialorder %v1822, 0.0
    %v1830 = vmul.f32 %v1738, 0.01
    %v1831 = vmul.f32 %v1740, 0.01
    %v1832 = vmul.f32 %v1820, 0.01
    %v1833 = vmul.f32 %v1822, 0.01
    %v1834 = vsel %vm1826, %v1738, %v1830
    %v1835 = vsel %vm1827, %v1740, %v1831
    %v1836 = vsel %vm1828, %v1820, %v1832
    %v1837 = vsel %vm1829, %v1822, %v1833
    %v1838 = vpack.c.bf16 %v1834, %v1834
    %v1839 = vpack.c.bf16 %v1835, %v1835
    %v1840 = vpack.c.bf16 %v1836, %v1836
    %v1841 = vpack.c.bf16 %v1837, %v1837
    %v1842 = vld [vmem:[#allocation8] sm:$0xf]
    %v1843 = vld [vmem:[#allocation8 + $0x4] sm:$0xf]
    %v1844 = vld [vmem:[#allocation8 + $0x8] sm:$0xf]
    %v1845 = vld [vmem:[#allocation8 + $0xc] sm:$0xf]
    %v1846 = vld [vmem:[#allocation8 + $0x10] sm:$0xf]
    %v1847 = vld [vmem:[#allocation8 + $0x14] sm:$0xf]
    %v1848 = vld [vmem:[#allocation8 + $0x18] sm:$0xf]
    %v1849 = vld [vmem:[#allocation8 + $0x1c] sm:$0xf]
    %v1850 = vld [vmem:[#allocation8 + $0x20] sm:$0xf]
    %v1851 = vld [vmem:[#allocation8 + $0x24] sm:$0xf]
    %v1852 = vld [vmem:[#allocation8 + $0x28] sm:$0xf]
    %v1853 = vld [vmem:[#allocation8 + $0x2c] sm:$0xf]
    %v1854 = vld [vmem:[#allocation8 + $0x30] sm:$0xf]
    %v1855 = vld [vmem:[#allocation8 + $0x34] sm:$0xf]
    %v1856 = vld [vmem:[#allocation8 + $0x38] sm:$0xf]
    %v1857 = vld [vmem:[#allocation8 + $0x3c] sm:$0xf]
    %v1858 = vld [vmem:[#allocation8 + $0x40] sm:$0xf]
    %v1859 = vld [vmem:[#allocation8 + $0x44] sm:$0xf]
    %v1860 = vld [vmem:[#allocation8 + $0x48] sm:$0xf]
    %v1861 = vld [vmem:[#allocation8 + $0x4c] sm:$0xf]
    %v1862 = vld [vmem:[#allocation8 + $0x50] sm:$0xf]
    %v1863 = vld [vmem:[#allocation8 + $0x54] sm:$0xf]
    %v1864 = vld [vmem:[#allocation8 + $0x58] sm:$0xf]
    %v1865 = vld [vmem:[#allocation8 + $0x5c] sm:$0xf]
    %v1866 = vld [vmem:[#allocation8 + $0x60] sm:$0xf]
    %v1867 = vld [vmem:[#allocation8 + $0x64] sm:$0xf]
    %v1868 = vld [vmem:[#allocation8 + $0x68] sm:$0xf]
    %v1869 = vld [vmem:[#allocation8 + $0x6c] sm:$0xf]
    %v1870 = vld [vmem:[#allocation8 + $0x70] sm:$0xf]
    %v1871 = vld [vmem:[#allocation8 + $0x74] sm:$0xf]
    %v1872 = vld [vmem:[#allocation8 + $0x78] sm:$0xf]
    %v1873 = vld [vmem:[#allocation8 + $0x7c] sm:$0xf]
    %v1874 = vld [vmem:[#allocation8 + $0x80] sm:$0xf]
    %v1875 = vld [vmem:[#allocation8 + $0x84] sm:$0xf]
    %v1876 = vld [vmem:[#allocation8 + $0x88] sm:$0xf]
    %v1877 = vld [vmem:[#allocation8 + $0x8c] sm:$0xf]
    %v1878 = vld [vmem:[#allocation8 + $0x90] sm:$0xf]
    %v1879 = vld [vmem:[#allocation8 + $0x94] sm:$0xf]
    %v1880 = vld [vmem:[#allocation8 + $0x98] sm:$0xf]
    %v1881 = vld [vmem:[#allocation8 + $0x9c] sm:$0xf]
    %v1882 = vld [vmem:[#allocation8 + $0xa0] sm:$0xf]
    %v1883 = vld [vmem:[#allocation8 + $0xa4] sm:$0xf]
    %v1884 = vld [vmem:[#allocation8 + $0xa8] sm:$0xf]
    %v1885 = vld [vmem:[#allocation8 + $0xac] sm:$0xf]
    %v1886 = vld [vmem:[#allocation8 + $0xb0] sm:$0xf]
    %v1887 = vld [vmem:[#allocation8 + $0xb4] sm:$0xf]
    %v1888 = vld [vmem:[#allocation8 + $0xb8] sm:$0xf]
    %v1889 = vld [vmem:[#allocation8 + $0xbc] sm:$0xf]
    %v1890 = vld [vmem:[#allocation8 + $0xc0] sm:$0xf]
    %v1891 = vld [vmem:[#allocation8 + $0xc4] sm:$0xf]
    %v1892 = vld [vmem:[#allocation8 + $0xc8] sm:$0xf]
    %v1893 = vld [vmem:[#allocation8 + $0xcc] sm:$0xf]
    %v1894 = vld [vmem:[#allocation8 + $0xd0] sm:$0xf]
    %v1895 = vld [vmem:[#allocation8 + $0xd4] sm:$0xf]
    %v1896 = vld [vmem:[#allocation8 + $0xd8] sm:$0xf]
    %v1897 = vld [vmem:[#allocation8 + $0xdc] sm:$0xf]
    %v1898 = vld [vmem:[#allocation8 + $0xe0] sm:$0xf]
    %v1899 = vld [vmem:[#allocation8 + $0xe4] sm:$0xf]
    %v1900 = vld [vmem:[#allocation8 + $0xe8] sm:$0xf]
    %v1901 = vld [vmem:[#allocation8 + $0xec] sm:$0xf]
    %v1902 = vld [vmem:[#allocation8 + $0xf0] sm:$0xf]
    %v1903 = vld [vmem:[#allocation8 + $0xf4] sm:$0xf]
    %v1904 = vld [vmem:[#allocation8 + $0xf8] sm:$0xf]
    %v1905 = vld [vmem:[#allocation8 + $0xfc] sm:$0xf]
    %v1906 = vld [vmem:[%s6] sm:$0x1]
    %v1908 = vlaneseq
    %v1909 = vshrl.u32 %v1908, 7
    %v1910 = vsub.s32 0, %v1909
    %v1911 = vrot.slane %v1906, %v1910
    %v1977 = vunpack.c.l.b16 %v1842
    %v1978 = vunpack.c.l.b16 %v1843
    %v1979 = vunpack.c.l.b16 %v1844
    %v1980 = vunpack.c.l.b16 %v1845
    %v1981 = vunpack.c.l.b16 %v1846
    %v1982 = vunpack.c.l.b16 %v1847
    %v1983 = vunpack.c.l.b16 %v1848
    %v1984 = vunpack.c.l.b16 %v1849
    %v1985 = vunpack.c.l.b16 %v1850
    %v1986 = vunpack.c.l.b16 %v1851
    %v1987 = vunpack.c.l.b16 %v1852
    %v1988 = vunpack.c.l.b16 %v1853
    %v1989 = vunpack.c.l.b16 %v1854
    %v1990 = vunpack.c.l.b16 %v1855
    %v1991 = vunpack.c.l.b16 %v1856
    %v1992 = vunpack.c.l.b16 %v1857
    %v1993 = vunpack.c.l.b16 %v1858
    %v1994 = vunpack.c.l.b16 %v1859
    %v1995 = vunpack.c.l.b16 %v1860
    %v1996 = vunpack.c.l.b16 %v1861
    %v1997 = vunpack.c.l.b16 %v1862
    %v1998 = vunpack.c.l.b16 %v1863
    %v1999 = vunpack.c.l.b16 %v1864
    %v2000 = vunpack.c.l.b16 %v1865
    %v2001 = vunpack.c.l.b16 %v1866
    %v2002 = vunpack.c.l.b16 %v1867
    %v2003 = vunpack.c.l.b16 %v1868
    %v2004 = vunpack.c.l.b16 %v1869
    %v2005 = vunpack.c.l.b16 %v1870
    %v2006 = vunpack.c.l.b16 %v1871
    %v2007 = vunpack.c.l.b16 %v1872
    %v2008 = vunpack.c.l.b16 %v1873
    %v2009 = vunpack.c.l.b16 %v1874
    %v2010 = vunpack.c.l.b16 %v1875
    %v2011 = vunpack.c.l.b16 %v1876
    %v2012 = vunpack.c.l.b16 %v1877
    %v2013 = vunpack.c.l.b16 %v1878
    %v2014 = vunpack.c.l.b16 %v1879
    %v2015 = vunpack.c.l.b16 %v1880
    %v2016 = vunpack.c.l.b16 %v1881
    %v2017 = vunpack.c.l.b16 %v1882
    %v2018 = vunpack.c.l.b16 %v1883
    %v2019 = vunpack.c.l.b16 %v1884
    %v2020 = vunpack.c.l.b16 %v1885
    %v2021 = vunpack.c.l.b16 %v1886
    %v2022 = vunpack.c.l.b16 %v1887
    %v2023 = vunpack.c.l.b16 %v1888
    %v2024 = vunpack.c.l.b16 %v1889
    %v2025 = vunpack.c.l.b16 %v1890
    %v2026 = vunpack.c.l.b16 %v1891
    %v2027 = vunpack.c.l.b16 %v1892
    %v2028 = vunpack.c.l.b16 %v1893
    %v2029 = vunpack.c.l.b16 %v1894
    %v2030 = vunpack.c.l.b16 %v1895
    %v2031 = vunpack.c.l.b16 %v1896
    %v2032 = vunpack.c.l.b16 %v1897
    %v2033 = vunpack.c.l.b16 %v1898
    %v2034 = vunpack.c.l.b16 %v1899
    %v2035 = vunpack.c.l.b16 %v1900
    %v2036 = vunpack.c.l.b16 %v1901
    %v2037 = vunpack.c.l.b16 %v1902
    %v2038 = vunpack.c.l.b16 %v1903
    %v2039 = vunpack.c.l.b16 %v1904
    %v2040 = vunpack.c.l.b16 %v1905
    %v2041 = vpack.c.b16 %v1978, %v1977
    %v2042 = vpack.c.b16 %v1980, %v1979
    %v2043 = vpack.c.b16 %v1982, %v1981
    %v2044 = vpack.c.b16 %v1984, %v1983
    %v2045 = vpack.c.b16 %v1986, %v1985
    %v2046 = vpack.c.b16 %v1988, %v1987
    %v2047 = vpack.c.b16 %v1990, %v1989
    %v2048 = vpack.c.b16 %v1992, %v1991
    %v2049 = vpack.c.b16 %v1994, %v1993
    %v2050 = vpack.c.b16 %v1996, %v1995
    %v2051 = vpack.c.b16 %v1998, %v1997
    %v2052 = vpack.c.b16 %v2000, %v1999
    %v2053 = vpack.c.b16 %v2002, %v2001
    %v2054 = vpack.c.b16 %v2004, %v2003
    %v2055 = vpack.c.b16 %v2006, %v2005
    %v2056 = vpack.c.b16 %v2008, %v2007
    %v2057 = vpack.c.b16 %v2010, %v2009
    %v2058 = vpack.c.b16 %v2012, %v2011
    %v2059 = vpack.c.b16 %v2014, %v2013
    %v2060 = vpack.c.b16 %v2016, %v2015
    %v2061 = vpack.c.b16 %v2018, %v2017
    %v2062 = vpack.c.b16 %v2020, %v2019
    %v2063 = vpack.c.b16 %v2022, %v2021
    %v2064 = vpack.c.b16 %v2024, %v2023
    %v2065 = vpack.c.b16 %v2026, %v2025
    %v2066 = vpack.c.b16 %v2028, %v2027
    %v2067 = vpack.c.b16 %v2030, %v2029
    %v2068 = vpack.c.b16 %v2032, %v2031
    %v2069 = vpack.c.b16 %v2034, %v2033
    %v2070 = vpack.c.b16 %v2036, %v2035
    %v2071 = vpack.c.b16 %v2038, %v2037
    %v2072 = vpack.c.b16 %v2040, %v2039
    %2105 = vmatprep.subr.bf16.mxu0 0
    %2106 = vmatpush1.bf16.msra.mxu0 %v2041
    %2107 = vmatprep.subr.bf16.mxu0 0
    %2108 = vmatpush1.bf16.msra.mxu0 %v2042
    %2109 = vmatprep.subr.bf16.mxu0 0
    %2110 = vmatpush1.bf16.msra.mxu0 %v2043
    %2111 = vmatprep.subr.bf16.mxu0 0
    %2112 = vmatpush1.bf16.msra.mxu0 %v2044
    %2113 = vmatprep.subr.bf16.mxu0 0
    %2114 = vmatpush1.bf16.msra.mxu0 %v2045
    %2115 = vmatprep.subr.bf16.mxu0 0
    %2116 = vmatpush1.bf16.msra.mxu0 %v2046
    %2117 = vmatprep.subr.bf16.mxu0 0
    %2118 = vmatpush1.bf16.msra.mxu0 %v2047
    %2119 = vmatprep.subr.bf16.mxu0 0
    %2120 = vmatpush1.bf16.msra.mxu0 %v2048
    %2121 = vmatprep.subr.bf16.mxu0 0
    %2122 = vmatpush1.bf16.msra.mxu0 %v2049
    %2123 = vmatprep.subr.bf16.mxu0 0
    %2124 = vmatpush1.bf16.msra.mxu0 %v2050
    %2125 = vmatprep.subr.bf16.mxu0 0
    %2126 = vmatpush1.bf16.msra.mxu0 %v2051
    %2127 = vmatprep.subr.bf16.mxu0 0
    %2128 = vmatpush1.bf16.msra.mxu0 %v2052
    %2129 = vmatprep.subr.bf16.mxu0 0
    %2130 = vmatpush1.bf16.msra.mxu0 %v2053
    %2131 = vmatprep.subr.bf16.mxu0 0
    %2132 = vmatpush1.bf16.msra.mxu0 %v2054
    %2133 = vmatprep.subr.bf16.mxu0 0
    %2134 = vmatpush1.bf16.msra.mxu0 %v2055
    %2135 = vmatprep.subr.bf16.mxu0 0
    %2136 = vmatpush1.bf16.msra.mxu0 %v2056
    %2137 = vmatprep.mubr.bf16.mxu0 %v1839
    %2138 = vmatmul.mubr.bf16.gmra.mrb[0].mxu0 %v1838
    %v2139 = vpop.f32.mrb[0].mxu0
    %v2140 = vadd.f32 %v1911, %v2139
    %v2141 = vpop.f32.mrb[0].mxu0
    %v2142 = vpop.f32.mrb[0].mxu0
    %v2143 = vpop.f32.mrb[0].mxu0
    %2144 = vdwg.mxu0
    %2145 = vmatprep.subr.bf16.mxu0 0
    %2146 = vmatpush1.bf16.msra.mxu0 %v2057
    %2147 = vmatprep.subr.bf16.mxu0 0
    %2148 = vmatpush1.bf16.msra.mxu0 %v2058
    %2149 = vmatprep.subr.bf16.mxu0 0
    %2150 = vmatpush1.bf16.msra.mxu0 %v2059
    %2151 = vmatprep.subr.bf16.mxu0 0
    %2152 = vmatpush1.bf16.msra.mxu0 %v2060
    %2153 = vmatprep.subr.bf16.mxu0 0
    %2154 = vmatpush1.bf16.msra.mxu0 %v2061
    %2155 = vmatprep.subr.bf16.mxu0 0
    %2156 = vmatpush1.bf16.msra.mxu0 %v2062
    %2157 = vmatprep.subr.bf16.mxu0 0
    %2158 = vmatpush1.bf16.msra.mxu0 %v2063
    %2159 = vmatprep.subr.bf16.mxu0 0
    %2160 = vmatpush1.bf16.msra.mxu0 %v2064
    %2161 = vmatprep.subr.bf16.mxu0 0
    %2162 = vmatpush1.bf16.msra.mxu0 %v2065
    %2163 = vmatprep.subr.bf16.mxu0 0
    %2164 = vmatpush1.bf16.msra.mxu0 %v2066
    %2165 = vmatprep.subr.bf16.mxu0 0
    %2166 = vmatpush1.bf16.msra.mxu0 %v2067
    %2167 = vmatprep.subr.bf16.mxu0 0
    %2168 = vmatpush1.bf16.msra.mxu0 %v2068
    %2169 = vmatprep.subr.bf16.mxu0 0
    %2170 = vmatpush1.bf16.msra.mxu0 %v2069
    %2171 = vmatprep.subr.bf16.mxu0 0
    %2172 = vmatpush1.bf16.msra.mxu0 %v2070
    %2173 = vmatprep.subr.bf16.mxu0 0
    %2174 = vmatpush1.bf16.msra.mxu0 %v2071
    %2175 = vmatprep.subr.bf16.mxu0 0
    %2176 = vmatpush1.bf16.msra.mxu0 %v2072
    %2177 = vmatprep.mubr.bf16.mxu0 %v1841
    %2178 = vmatmul.mubr.bf16.gmra.mrb[0].mxu0 %v1840
    %v2179 = vpop.f32.mrb[0].mxu0
    %v2180 = vadd.f32 %v2140, %v2179
    %v2181 = vpop.f32.mrb[0].mxu0
    %v2182 = vpop.f32.mrb[0].mxu0
    %v2183 = vpop.f32.mrb[0].mxu0
    %2184 = vdwg.mxu0
    %2185 = vst [vmem:[#allocation10] sm:$0xff] %v2180
    // Predicated region
    $region46: #{tpu_custom_call.1} parent=1 // pred_check
      _
    $region47: #{tpu_custom_call.1} parent=1 // pred_check_branch
      %2187 = sbr.rel (0) target = $region49
    $region48: #{tpu_custom_call.1} parent=1 // pred_region
      %s2189 = ssub.s32 128, 128
      %2190 = vsyncadd [#allocation4], %s2189
      %s2192 = sshll.u32 [#allocation10], 4
      %s2193 = int_to_ptr.vmem [resolvable:$true] %s2192
      %2195 = dma.vmem_to_hbm [thread:$0]  %s2193, 128, %s7, [#allocation4]
    $region49: #{tpu_custom_call.1} parent=1 // pred_fallthru
      _
    // Predicated region
    $region50: #{tpu_custom_call.1} parent=1 // pred_check
      _
    $region51: #{tpu_custom_call.1} parent=1 // pred_check_branch
      %2197 = sbr.rel (0) target = $region53
    $region52: #{tpu_custom_call.1} parent=1 // pred_region
      %2198 = dma.done [#allocation4], 128
    $region53: #{tpu_custom_call.1} parent=1 // pred_fallthru
      _
    %2199 = vsyncpa [#allocation3], 1
    %2200 = vsyncpa [#allocation6], 1
    %2201 = vsyncpa [#allocation9], 1
    %2202 = vsyncpa [#allocation4], 1

</llo_original>
